<compile_context>
chip_gen: v6e
topology: v6e:2x2x1
jax: 0.10.0
libtpu: 0.0.40
codegen_flags: <defaults>
</compile_context>

<pallas_src>
import jax
import jax.numpy as jnp
from jax.experimental import pallas as pl
from jax.experimental.pallas import tpu as pltpu


def _round_up(x: int, m: int) -> int:
    return (x + m - 1) // m * m


def _pad_to(x, target_shape):
    pads = [(0, t - s) for s, t in zip(x.shape, target_shape)]
    return jnp.pad(x, pads)


def attention_kernel(enc_ref, dec_ref, cov_ref, mask_ref,
                     wenc_ref, wdec_ref, wcov_ref, wproj_ref, bias_ref,
                     a_ref, hstar_ref, newcov_ref):
    t_b, l_p, e_dim = enc_ref.shape            # (tB, Lp, 2H)
    h_dim = wdec_ref.shape[1]

    enc = enc_ref[...]                         # (tB, Lp, 2H)  f32 or bf16
    dec = dec_ref[...]                         # (tB, H)       f32
    cov = cov_ref[...]                         # (tB, Lp)      f32
    mask = mask_ref[...]                       # (tB, Lp)      f32
    bias = bias_ref[0]                         # scalar (SMEM)

    # proj_enc_h(enc_h): one big MXU matmul with M = tB*Lp (fills MXU rows).
    w_enc = wenc_ref[...].astype(enc.dtype)
    proj_enc = jnp.dot(enc.reshape(t_b * l_p, e_dim), w_enc,
                       preferred_element_type=jnp.float32)
    proj_enc = proj_enc.reshape(t_b, l_p, h_dim)

    # proj_dec_h(dec_h): (tB, H) @ (H, H), broadcast over L.
    proj_dec = jnp.dot(dec, wdec_ref[...], preferred_element_type=jnp.float32)

    # proj_coverage_vec(coverage.unsqueeze(-1)): rank-1 -> pure VPU.
    w_cov_row = wcov_ref[...]                  # (1, H)
    proj_cov = cov[:, :, None] * w_cov_row[None, :, :]          # (tB, Lp, H)

    t = jnp.tanh(proj_enc + proj_dec[:, None, :] + proj_cov + bias)

    # e = proj(tanh(...)).squeeze(-1): N=1 projection as VPU mul + lane reduce.
    w_proj_row = wproj_ref[...]                # (1, H)
    e = jnp.sum(t * w_proj_row[None, :, :], axis=-1)             # (tB, Lp)

    # Masked softmax over Lp. Mask is folded additively (masked lanes -> -1e30,
    # exp underflows to exactly 0), so no post-exp multiply is needed.
    # NOTE: a fully-masked row yields a uniform (finite) distribution here,
    # whereas the torch reference would produce NaN; valid rows are identical.
    e_masked = e + (mask - 1.0) * 1e30
    e_max = jnp.max(e_masked, axis=-1, keepdims=True)
    ex = jnp.exp(e_masked - e_max)
    denom = jnp.sum(ex, axis=-1, keepdims=True)
    a = ex * pl.reciprocal(denom, approx=True)

    a_ref[...] = a
    newcov_ref[...] = cov + a

    # h_star = bmm(a.unsqueeze(1), enc_h).squeeze(1): M=1 bmm -> VPU multiply
    # + sublane reduce over L (f32 accumulation).
    hstar_ref[...] = jnp.sum(a[:, :, None] * enc.astype(jnp.float32), axis=1)


def attention_pallas(enc_h, dec_h, coverage_vec, mask, params,
                     *, enc_compute_dtype=jnp.bfloat16,
                     vmem_limit_bytes=48 * 1024 * 1024):
    f32 = jnp.float32
    B, L, E = enc_h.shape
    H = dec_h.shape[-1]

    # ---- lane-dense padding of the sequence axis ---------------------------
    Lp = _round_up(L, 128)

    # ---- batch tile sized against the VMEM budget (v5e/v6e/v7x safe) -------
    enc_bytes = jnp.dtype(enc_compute_dtype).itemsize
    per_row = Lp * (2 * E * enc_bytes          # enc tile, double-buffered
                    + 2 * E * 4                # f32 enc copy + a*enc product
                    + 3 * H * 4                # proj_enc / proj_cov / tanh tiles
                    + 10 * 4)                  # cov/mask/a/new_cov (+ dbl buffer)
    budget = vmem_limit_bytes // 2             # headroom for compiler scratch
    t_b = int(max(1, budget // per_row))
    if t_b >= B:
        t_b = B                                # single block: full batch
    else:
        t_b = max(8, (t_b // 8) * 8)           # keep sublane dims 8-aligned
    Bp = _round_up(B, t_b)

    # ---- pad inputs (padded rows/cols get mask 0 -> zero attention) --------
    enc_p = _pad_to(enc_h.astype(f32), (Bp, Lp, E)).astype(enc_compute_dtype)
    dec_p = _pad_to(dec_h.astype(f32), (Bp, H))
    cov_p = _pad_to(coverage_vec.astype(f32), (Bp, Lp))
    mask_p = _pad_to(mask.astype(f32), (Bp, Lp))

    grid = (Bp // t_b,)

    in_specs = [
        pl.BlockSpec((t_b, Lp, E), lambda i: (i, 0, 0)),      # enc_h
        pl.BlockSpec((t_b, H),     lambda i: (i, 0)),         # dec_h
        pl.BlockSpec((t_b, Lp),    lambda i: (i, 0)),         # coverage
        pl.BlockSpec((t_b, Lp),    lambda i: (i, 0)),         # mask
        pl.BlockSpec((E, H),       lambda i: (0, 0)),         # w_enc (resident)
        pl.BlockSpec((H, H),       lambda i: (0, 0)),         # w_dec
        pl.BlockSpec((1, H),       lambda i: (0, 0)),         # w_cov
        pl.BlockSpec((1, H),       lambda i: (0, 0)),         # w_proj
        pl.BlockSpec(memory_space=pltpu.MemorySpace.SMEM),    # bias scalar
    ]
    out_specs = (
        pl.BlockSpec((t_b, Lp), lambda i: (i, 0)),            # a
        pl.BlockSpec((t_b, E),  lambda i: (i, 0)),            # h_star
        pl.BlockSpec((t_b, Lp), lambda i: (i, 0)),            # new coverage
    )
    out_shapes = (
        jax.ShapeDtypeStruct((Bp, Lp), f32),
        jax.ShapeDtypeStruct((Bp, E), f32),
        jax.ShapeDtypeStruct((Bp, Lp), f32),
    )

    fn = pl.pallas_call(
        attention_kernel,
        out_shape=out_shapes,
        grid=grid,
        in_specs=in_specs,
        out_specs=out_specs,
        compiler_params=pltpu.CompilerParams(
            dimension_semantics=("parallel",),
            vmem_limit_bytes=vmem_limit_bytes),
    )
    a_p, h_star_p, new_cov_p = fn(
        enc_p, dec_p, cov_p, mask_p,
        params['w_enc'], params['w_dec'], params['w_cov'],
        params['w_proj'], params['bias'])

    a = a_p[:B, :L]
    h_star = h_star_p[:B]
    new_cov = new_cov_p[:B, :L]
    # Coverage loss: tiny reduction over already-available arrays; done in the
    # wrapper to avoid a lane-width-1 kernel output (masked partial stores).
    covloss = jnp.sum(jnp.minimum(a, coverage_vec.astype(f32)), axis=-1)
    return a, h_star, new_cov, covloss


def attention_reference(enc_h, dec_h, coverage_vec, mask, params):
    """Pure-JAX f32 reference, mirrors the PyTorch forward."""
    proj_sum = (jnp.einsum('ble,eh->blh', enc_h, params['w_enc'])
                + (dec_h @ params['w_dec'])[:, None, :]
                + coverage_vec[:, :, None] * params['w_cov'][0][None, None, :])
    e = jnp.einsum('blh,h->bl', jnp.tanh(proj_sum + params['bias'][0]),
                   params['w_proj'][0])
    e_masked = jnp.where(mask > 0, e, -1e30)
    ex = jnp.exp(e_masked - jnp.max(e_masked, axis=-1, keepdims=True)) * mask
    a = ex / jnp.sum(ex, axis=-1, keepdims=True)
    h_star = jnp.einsum('bl,ble->be', a, enc_h)
    new_cov = coverage_vec + a
    covloss = jnp.sum(jnp.minimum(a, coverage_vec), axis=-1)
    return a, h_star, new_cov, covloss


if __name__ == "__main__":
    B, L, H = 2, 8, 32
    E = 2 * H

    key = jax.random.PRNGKey(0)
    k = jax.random.split(key, 8)

    # PyTorch Linear weights are (out, in); matmul weights stored transposed,
    # the rank-1 projections stored as (1, H) rows.
    params = {
        'w_enc':  jax.random.uniform(k[0], (E, H), jnp.float32, -0.1, 0.1),
        'w_dec':  jax.random.uniform(k[1], (H, H), jnp.float32, -0.1, 0.1),
        'w_cov':  jax.random.uniform(k[2], (1, H), jnp.float32, -0.1, 0.1),
        'w_proj': jax.random.uniform(k[3], (1, H), jnp.float32, -0.1, 0.1),
        'bias':   jnp.zeros((1,), jnp.float32),
    }

    enc_h = jax.random.normal(k[4], (B, L, E), jnp.float32)
    dec_h = jax.random.normal(k[5], (B, H), jnp.float32)
    coverage_vec = jax.random.uniform(k[6], (B, L), jnp.float32)
    lengths = jnp.array([L, 5], dtype=jnp.int32)
    mask = (jnp.arange(L)[None, :] < lengths[:, None]).astype(jnp.float32)

    refs = attention_reference(enc_h, dec_h, coverage_vec, mask, params)

    # f32 path (tolerance covers the approx EUP reciprocal) and bf16 path
    # (tolerance additionally covers bf16 rounding of the enc_h matmul).
    for dtype, tol in ((jnp.float32, 5e-3), (jnp.bfloat16, 2e-2)):
        outs = attention_pallas(enc_h, dec_h, coverage_vec, mask, params,
                                enc_compute_dtype=dtype)
        outs = jax.block_until_ready(outs)
        for name, o, r in zip(("a", "h_star", "new_cov", "covloss"), outs, refs):
            assert jnp.allclose(o, r, atol=tol, rtol=tol), (name, str(dtype), o, r)

    print("KERNEL_OK")
</pallas_src>

<mosaic_0001>
module attributes {stable_mosaic.version = 11 : i64} {
  func.func @attention_kernel(%arg0: i32, %arg1: memref<2x128x64xf32, #tpu.memory_space<vmem>>, %arg2: memref<2x32xf32, #tpu.memory_space<vmem>>, %arg3: memref<2x128xf32, #tpu.memory_space<vmem>>, %arg4: memref<2x128xf32, #tpu.memory_space<vmem>>, %arg5: memref<64x32xf32, #tpu.memory_space<vmem>>, %arg6: memref<32x32xf32, #tpu.memory_space<vmem>>, %arg7: memref<1x32xf32, #tpu.memory_space<vmem>>, %arg8: memref<1x32xf32, #tpu.memory_space<vmem>>, %arg9: memref<1xf32, #tpu.memory_space<smem>>, %arg10: memref<2x128xf32, #tpu.memory_space<vmem>>, %arg11: memref<2x64xf32, #tpu.memory_space<vmem>>, %arg12: memref<2x128xf32, #tpu.memory_space<vmem>>) attributes {dimension_semantics = [#tpu.dimension_semantics<parallel>], iteration_bounds = array<i64: 1>, scalar_prefetch = 0 : i64, scratch_operands = 0 : i64, tpu.core_type = #tpu.core_type<tc>, window_params = [{transform_indices = @transform_0, window_bounds = array<i64: 2, 128, 64>}, {transform_indices = @transform_1, window_bounds = array<i64: 2, 32>}, {transform_indices = @transform_2, window_bounds = array<i64: 2, 128>}, {transform_indices = @transform_3, window_bounds = array<i64: 2, 128>}, {pipeline_mode = #tpu.pipeline_mode<synchronous>, transform_indices = @transform_4, window_bounds = array<i64: 64, 32>}, {pipeline_mode = #tpu.pipeline_mode<synchronous>, transform_indices = @transform_5, window_bounds = array<i64: 32, 32>}, {pipeline_mode = #tpu.pipeline_mode<synchronous>, transform_indices = @transform_6, window_bounds = array<i64: 1, 32>}, {pipeline_mode = #tpu.pipeline_mode<synchronous>, transform_indices = @transform_7, window_bounds = array<i64: 1, 32>}, {transform_indices = @transform_8, window_bounds = array<i64: 1>}, {transform_indices = @transform_9, window_bounds = array<i64: 2, 128>}, {transform_indices = @transform_10, window_bounds = array<i64: 2, 64>}, {transform_indices = @transform_11, window_bounds = array<i64: 2, 128>}]} {
    %c0 = arith.constant 0 : index
    %c0_0 = arith.constant 0 : index
    %c0_1 = arith.constant 0 : index
    %0 = vector.load %arg1[%c0, %c0_0, %c0_1] : memref<2x128x64xf32, #tpu.memory_space<vmem>>, vector<2x128x64xf32>
    %c0_2 = arith.constant 0 : index
    %c0_3 = arith.constant 0 : index
    %1 = vector.load %arg2[%c0_2, %c0_3] : memref<2x32xf32, #tpu.memory_space<vmem>>, vector<2x32xf32>
    %c0_4 = arith.constant 0 : index
    %c0_5 = arith.constant 0 : index
    %2 = vector.load %arg3[%c0_4, %c0_5] : memref<2x128xf32, #tpu.memory_space<vmem>>, vector<2x128xf32>
    %c0_6 = arith.constant 0 : index
    %c0_7 = arith.constant 0 : index
    %3 = vector.load %arg4[%c0_6, %c0_7] : memref<2x128xf32, #tpu.memory_space<vmem>>, vector<2x128xf32>
    %c0_8 = arith.constant 0 : index
    %4 = memref.load %arg9[%c0_8] : memref<1xf32, #tpu.memory_space<smem>>
    %c0_9 = arith.constant 0 : index
    %c0_10 = arith.constant 0 : index
    %5 = vector.load %arg5[%c0_9, %c0_10] : memref<64x32xf32, #tpu.memory_space<vmem>>, vector<64x32xf32>
    %6 = vector.shape_cast %0 : vector<2x128x64xf32> to vector<256x64xf32>
    %cst = arith.constant dense<0.000000e+00> : vector<256x32xf32>
    %7 = tpu.matmul %6, %5, %cst {dimension_numbers = #tpu.dot_dimension_numbers<[1], [0], [0], [1], [0, 0, 1, 1], [], []>} : vector<256x64xf32>, vector<64x32xf32>, vector<256x32xf32> -> vector<256x32xf32>
    %8 = vector.shape_cast %7 : vector<256x32xf32> to vector<2x128x32xf32>
    %c0_11 = arith.constant 0 : index
    %c0_12 = arith.constant 0 : index
    %9 = vector.load %arg6[%c0_11, %c0_12] : memref<32x32xf32, #tpu.memory_space<vmem>>, vector<32x32xf32>
    %cst_13 = arith.constant dense<0.000000e+00> : vector<2x32xf32>
    %10 = tpu.matmul %1, %9, %cst_13 {dimension_numbers = #tpu.dot_dimension_numbers<[1], [0], [0], [1], [0, 0, 1, 1], [], []>} : vector<2x32xf32>, vector<32x32xf32>, vector<2x32xf32> -> vector<2x32xf32>
    %c0_14 = arith.constant 0 : index
    %c0_15 = arith.constant 0 : index
    %11 = vector.load %arg7[%c0_14, %c0_15] : memref<1x32xf32, #tpu.memory_space<vmem>>, vector<1x32xf32>
    %12 = vector.shape_cast %2 : vector<2x128xf32> to vector<2x128x1xf32>
    %13 = vector.shape_cast %11 : vector<1x32xf32> to vector<1x1x32xf32>
    %14 = vector.broadcast %12 : vector<2x128x1xf32> to vector<2x128x32xf32>
    %15 = vector.broadcast %13 : vector<1x1x32xf32> to vector<2x128x32xf32>
    %16 = arith.mulf %14, %15 : vector<2x128x32xf32>
    %17 = vector.shape_cast %10 : vector<2x32xf32> to vector<2x1x32xf32>
    %18 = vector.broadcast %17 : vector<2x1x32xf32> to vector<2x128x32xf32>
    %19 = arith.addf %8, %18 : vector<2x128x32xf32>
    %20 = arith.addf %19, %16 : vector<2x128x32xf32>
    %21 = vector.broadcast %4 : f32 to vector<2x128x32xf32>
    %22 = arith.addf %20, %21 : vector<2x128x32xf32>
    %23 = math.tanh %22 : vector<2x128x32xf32>
    %c0_16 = arith.constant 0 : index
    %c0_17 = arith.constant 0 : index
    %24 = vector.load %arg8[%c0_16, %c0_17] : memref<1x32xf32, #tpu.memory_space<vmem>>, vector<1x32xf32>
    %25 = vector.shape_cast %24 : vector<1x32xf32> to vector<1x1x32xf32>
    %26 = vector.broadcast %25 : vector<1x1x32xf32> to vector<2x128x32xf32>
    %27 = arith.mulf %23, %26 : vector<2x128x32xf32>
    %cst_18 = arith.constant dense<0.000000e+00> : vector<2x128xf32>
    %28 = vector.multi_reduction <add>, %27, %cst_18 [2] : vector<2x128x32xf32> to vector<2x128xf32>
    %cst_19 = arith.constant 1.000000e+00 : f32
    %29 = vector.broadcast %cst_19 : f32 to vector<2x128xf32>
    %30 = arith.subf %3, %29 : vector<2x128xf32>
    %cst_20 = arith.constant 1.000000e+30 : f32
    %31 = vector.broadcast %cst_20 : f32 to vector<2x128xf32>
    %32 = arith.mulf %30, %31 : vector<2x128xf32>
    %33 = arith.addf %28, %32 : vector<2x128xf32>
    %cst_21 = arith.constant dense<0xFF800000> : vector<2xf32>
    %34 = vector.multi_reduction <maximumf>, %33, %cst_21 [1] : vector<2x128xf32> to vector<2xf32>
    %35 = vector.shape_cast %34 : vector<2xf32> to vector<2x1xf32>
    %36 = vector.broadcast %35 : vector<2x1xf32> to vector<2x128xf32>
    %37 = arith.subf %33, %36 : vector<2x128xf32>
    %38 = math.exp %37 : vector<2x128xf32>
    %cst_22 = arith.constant dense<0.000000e+00> : vector<2xf32>
    %39 = vector.multi_reduction <add>, %38, %cst_22 [1] : vector<2x128xf32> to vector<2xf32>
    %40 = vector.shape_cast %39 : vector<2xf32> to vector<2x1xf32>
    %41 = tpu.reciprocal %40 {approx = true} : vector<2x1xf32> -> vector<2x1xf32>
    %42 = vector.broadcast %41 : vector<2x1xf32> to vector<2x128xf32>
    %43 = arith.mulf %38, %42 : vector<2x128xf32>
    %c0_23 = arith.constant 0 : index
    %c0_24 = arith.constant 0 : index
    %44 = vector.load %arg10[%c0_23, %c0_24] : memref<2x128xf32, #tpu.memory_space<vmem>>, vector<2x128xf32>
    tpu.vector_store %arg10[%c0_23, %c0_24], %43 {strides = array<i32>} : memref<2x128xf32, #tpu.memory_space<vmem>>, vector<2x128xf32>,
    %45 = arith.addf %2, %43 : vector<2x128xf32>
    %c0_25 = arith.constant 0 : index
    %c0_26 = arith.constant 0 : index
    %46 = vector.load %arg12[%c0_25, %c0_26] : memref<2x128xf32, #tpu.memory_space<vmem>>, vector<2x128xf32>
    tpu.vector_store %arg12[%c0_25, %c0_26], %45 {strides = array<i32>} : memref<2x128xf32, #tpu.memory_space<vmem>>, vector<2x128xf32>,
    %47 = vector.shape_cast %43 : vector<2x128xf32> to vector<2x128x1xf32>
    %48 = vector.broadcast %47 : vector<2x128x1xf32> to vector<2x128x64xf32>
    %49 = arith.mulf %48, %0 : vector<2x128x64xf32>
    %cst_27 = arith.constant dense<0.000000e+00> : vector<2x64xf32>
    %50 = vector.multi_reduction <add>, %49, %cst_27 [1] : vector<2x128x64xf32> to vector<2x64xf32>
    %c0_28 = arith.constant 0 : index
    %c0_29 = arith.constant 0 : index
    %51 = vector.load %arg11[%c0_28, %c0_29] : memref<2x64xf32, #tpu.memory_space<vmem>>, vector<2x64xf32>
    tpu.vector_store %arg11[%c0_28, %c0_29], %50 {strides = array<i32>} : memref<2x64xf32, #tpu.memory_space<vmem>>, vector<2x64xf32>,
    return
  }
  func.func @transform_0(%arg0: i32) -> (i32, i32, i32) {
    %c0_i32 = arith.constant 0 : i32
    %c0_i32_0 = arith.constant 0 : i32
    %c0_i32_1 = arith.constant 0 : i32
    return %arg0, %c0_i32, %c0_i32_0 : i32, i32, i32
  }
  func.func @transform_1(%arg0: i32) -> (i32, i32) {
    %c0_i32 = arith.constant 0 : i32
    %c0_i32_0 = arith.constant 0 : i32
    return %arg0, %c0_i32 : i32, i32
  }
  func.func @transform_2(%arg0: i32) -> (i32, i32) {
    %c0_i32 = arith.constant 0 : i32
    %c0_i32_0 = arith.constant 0 : i32
    return %arg0, %c0_i32 : i32, i32
  }
  func.func @transform_3(%arg0: i32) -> (i32, i32) {
    %c0_i32 = arith.constant 0 : i32
    %c0_i32_0 = arith.constant 0 : i32
    return %arg0, %c0_i32 : i32, i32
  }
  func.func @transform_4(%arg0: i32) -> (i32, i32) {
    %c0_i32 = arith.constant 0 : i32
    %c0_i32_0 = arith.constant 0 : i32
    %c0_i32_1 = arith.constant 0 : i32
    return %c0_i32, %c0_i32_0 : i32, i32
  }
  func.func @transform_5(%arg0: i32) -> (i32, i32) {
    %c0_i32 = arith.constant 0 : i32
    %c0_i32_0 = arith.constant 0 : i32
    %c0_i32_1 = arith.constant 0 : i32
    return %c0_i32, %c0_i32_0 : i32, i32
  }
  func.func @transform_6(%arg0: i32) -> (i32, i32) {
    %c0_i32 = arith.constant 0 : i32
    %c0_i32_0 = arith.constant 0 : i32
    %c0_i32_1 = arith.constant 0 : i32
    return %c0_i32, %c0_i32_0 : i32, i32
  }
  func.func @transform_7(%arg0: i32) -> (i32, i32) {
    %c0_i32 = arith.constant 0 : i32
    %c0_i32_0 = arith.constant 0 : i32
    %c0_i32_1 = arith.constant 0 : i32
    return %c0_i32, %c0_i32_0 : i32, i32
  }
  func.func @transform_8(%arg0: i32) -> i32 {
    %c0_i32 = arith.constant 0 : i32
    %c0_i32_0 = arith.constant 0 : i32
    return %c0_i32 : i32
  }
  func.func @transform_9(%arg0: i32) -> (i32, i32) {
    %c0_i32 = arith.constant 0 : i32
    %c0_i32_0 = arith.constant 0 : i32
    return %arg0, %c0_i32 : i32, i32
  }
  func.func @transform_10(%arg0: i32) -> (i32, i32) {
    %c0_i32 = arith.constant 0 : i32
    %c0_i32_0 = arith.constant 0 : i32
    return %arg0, %c0_i32 : i32, i32
  }
  func.func @transform_11(%arg0: i32) -> (i32, i32) {
    %c0_i32 = arith.constant 0 : i32
    %c0_i32_0 = arith.constant 0 : i32
    return %arg0, %c0_i32 : i32, i32
  }
}

</mosaic_0001>

<llo_original>
// kernel: tpu_custom_call.1
$region0: #{tpu_custom_call.1}
  #allocation0 [shape = 'u32[]', space=smem, size = 0x4, offset = 0x4, fixed_abs, tag = 'smem constant byte address 0x4 - core index']
  #allocation1 [shape = 'u32[144,128]{1,0:T(1,128)}', space=vmem, size = 0x12000, scoped, tag = 'internal scratch']
  #allocation2 [shape = 'f32[1]{0:T(128)S(6)}', space=smem, size = 0x200, scoped, tag = 'scoped memory for tpu_custom_call.1']
  %s0 = inlined_call_operand.vmem [shape: f32[2,128,64], index: 0, kind: input, shape index: {}]
  %s1 = inlined_call_operand.vmem [shape: f32[2,32], index: 1, kind: input, shape index: {}]
  %s2 = inlined_call_operand.vmem [shape: f32[2,128], index: 2, kind: input, shape index: {}]
  %s3 = inlined_call_operand.vmem [shape: f32[2,128], index: 3, kind: input, shape index: {}]
  %s4 = inlined_call_operand.vmem [shape: f32[64,32], index: 4, kind: input, shape index: {}]
  %s5 = inlined_call_operand.vmem [shape: f32[32,32], index: 5, kind: input, shape index: {}]
  %s6 = inlined_call_operand.vmem [shape: f32[1,32], index: 6, kind: input, shape index: {}]
  %s7 = inlined_call_operand.vmem [shape: f32[1,32], index: 7, kind: input, shape index: {}]
  %s8 = inlined_call_operand.<no memory space> [shape: f32[1], index: 8, kind: input, shape index: {}]
  %s9 = inlined_call_operand.hbm [shape: f32[2,128], index: 9, kind: output, shape index: {0}]
  %s10 = inlined_call_operand.hbm [shape: f32[2,64], index: 10, kind: output, shape index: {1}]
  %s11 = inlined_call_operand.hbm [shape: f32[2,128], index: 11, kind: output, shape index: {2}]
  %12 = xla_tuple %s9, %s10, %s11
  %s13 = sld [smem:[#allocation0]]
  $region62: #{tpu_custom_call.1} parent=0
    _
  %s15 = ssub.s32 1, %s13
  %s16 = scalar_select 0, %s15, %s13
  %17 = sst [smem:[#allocation2]] %s8
  $region1: #{tpu_custom_call.1} parent=0
    #allocation3 [shape = 'u8[1024]{0}', space=vmem, size = 0x400, scoped, tag = 'output window, operand 0, single buffered']
    #allocation4 [shape = 's32[1]{0}', space=sflag, size = 0x4, scoped, tag = 'scoped memory for tpu_custom_call.1']
    #allocation5 [shape = 'u8[1024]{0}', space=vmem, size = 0x400, scoped, tag = 'output window, operand 1, single buffered']
    #allocation6 [shape = 's32[1]{0}', space=sflag, size = 0x4, scoped, tag = 'scoped memory for tpu_custom_call.1']
    #allocation7 [shape = 'u8[1024]{0}', space=vmem, size = 0x400, scoped, tag = 'output window, operand 2, single buffered']
    %18 = vsyncpa [#allocation4], 0
    %19 = vsyncpa [#allocation6], 0
    // Predicated region
    $region2: #{tpu_custom_call.1} parent=1 // pred_check
      _
    $region3: #{tpu_custom_call.1} parent=1 // pred_check_branch
      %21 = sbr.rel (0) target = $region5
    $region4: #{tpu_custom_call.1} parent=1 // pred_region
      _
    $region5: #{tpu_custom_call.1} parent=1 // pred_fallthru
      _
    // Predicated region
    $region6: #{tpu_custom_call.1} parent=1 // pred_check
      _
    $region7: #{tpu_custom_call.1} parent=1 // pred_check_branch
      %23 = sbr.rel (0) target = $region9
    $region8: #{tpu_custom_call.1} parent=1 // pred_region
      _
    $region9: #{tpu_custom_call.1} parent=1 // pred_fallthru
      _
    // Predicated region
    $region10: #{tpu_custom_call.1} parent=1 // pred_check
      _
    $region11: #{tpu_custom_call.1} parent=1 // pred_check_branch
      %25 = sbr.rel (0) target = $region13
    $region12: #{tpu_custom_call.1} parent=1 // pred_region
      _
    $region13: #{tpu_custom_call.1} parent=1 // pred_fallthru
      _
    // Predicated region
    $region14: #{tpu_custom_call.1} parent=1 // pred_check
      _
    $region15: #{tpu_custom_call.1} parent=1 // pred_check_branch
      %27 = sbr.rel (0) target = $region17
    $region16: #{tpu_custom_call.1} parent=1 // pred_region
      _
    $region17: #{tpu_custom_call.1} parent=1 // pred_fallthru
      _
    // Predicated region
    $region18: #{tpu_custom_call.1} parent=1 // pred_check
      _
    $region19: #{tpu_custom_call.1} parent=1 // pred_check_branch
      %29 = sbr.rel (0) target = $region21
    $region20: #{tpu_custom_call.1} parent=1 // pred_region
      _
    $region21: #{tpu_custom_call.1} parent=1 // pred_fallthru
      _
    // Predicated region
    $region22: #{tpu_custom_call.1} parent=1 // pred_check
      _
    $region23: #{tpu_custom_call.1} parent=1 // pred_check_branch
      %31 = sbr.rel (0) target = $region25
    $region24: #{tpu_custom_call.1} parent=1 // pred_region
      _
    $region25: #{tpu_custom_call.1} parent=1 // pred_fallthru
      _
    // Predicated region
    $region26: #{tpu_custom_call.1} parent=1 // pred_check
      _
    $region27: #{tpu_custom_call.1} parent=1 // pred_check_branch
      %33 = sbr.rel (0) target = $region29
    $region28: #{tpu_custom_call.1} parent=1 // pred_region
      _
    $region29: #{tpu_custom_call.1} parent=1 // pred_fallthru
      _
    // Predicated region
    $region30: #{tpu_custom_call.1} parent=1 // pred_check
      _
    $region31: #{tpu_custom_call.1} parent=1 // pred_check_branch
      %35 = sbr.rel (0) target = $region33
    $region32: #{tpu_custom_call.1} parent=1 // pred_region
      _
    $region33: #{tpu_custom_call.1} parent=1 // pred_fallthru
      _
    // Predicated region
    $region34: #{tpu_custom_call.1} parent=1 // pred_check
      _
    $region35: #{tpu_custom_call.1} parent=1 // pred_check_branch
      %37 = sbr.rel (0) target = $region37
    $region36: #{tpu_custom_call.1} parent=1 // pred_region
      _
    $region37: #{tpu_custom_call.1} parent=1 // pred_fallthru
      _
    %v38 = vld [vmem:[%s0] sm:$0xff]
    %v39 = vld [vmem:[%s0 + $0x8] sm:$0xff]
    %v40 = vld [vmem:[%s0 + $0x10] sm:$0xff]
    %v41 = vld [vmem:[%s0 + $0x18] sm:$0xff]
    %v42 = vld [vmem:[%s0 + $0x20] sm:$0xff]
    %v43 = vld [vmem:[%s0 + $0x28] sm:$0xff]
    %v44 = vld [vmem:[%s0 + $0x30] sm:$0xff]
    %v45 = vld [vmem:[%s0 + $0x38] sm:$0xff]
    %v46 = vld [vmem:[%s0 + $0x40] sm:$0xff]
    %v47 = vld [vmem:[%s0 + $0x48] sm:$0xff]
    %v48 = vld [vmem:[%s0 + $0x50] sm:$0xff]
    %v49 = vld [vmem:[%s0 + $0x58] sm:$0xff]
    %v50 = vld [vmem:[%s0 + $0x60] sm:$0xff]
    %v51 = vld [vmem:[%s0 + $0x68] sm:$0xff]
    %v52 = vld [vmem:[%s0 + $0x70] sm:$0xff]
    %v53 = vld [vmem:[%s0 + $0x78] sm:$0xff]
    %v54 = vld [vmem:[%s0 + $0x80] sm:$0xff]
    %v55 = vld [vmem:[%s0 + $0x88] sm:$0xff]
    %v56 = vld [vmem:[%s0 + $0x90] sm:$0xff]
    %v57 = vld [vmem:[%s0 + $0x98] sm:$0xff]
    %v58 = vld [vmem:[%s0 + $0xa0] sm:$0xff]
    %v59 = vld [vmem:[%s0 + $0xa8] sm:$0xff]
    %v60 = vld [vmem:[%s0 + $0xb0] sm:$0xff]
    %v61 = vld [vmem:[%s0 + $0xb8] sm:$0xff]
    %v62 = vld [vmem:[%s0 + $0xc0] sm:$0xff]
    %v63 = vld [vmem:[%s0 + $0xc8] sm:$0xff]
    %v64 = vld [vmem:[%s0 + $0xd0] sm:$0xff]
    %v65 = vld [vmem:[%s0 + $0xd8] sm:$0xff]
    %v66 = vld [vmem:[%s0 + $0xe0] sm:$0xff]
    %v67 = vld [vmem:[%s0 + $0xe8] sm:$0xff]
    %v68 = vld [vmem:[%s0 + $0xf0] sm:$0xff]
    %v69 = vld [vmem:[%s0 + $0xf8] sm:$0xff]
    %v70 = vld [vmem:[%s1] sm:$0x3]
    %v71 = vld [vmem:[%s2] sm:$0x3]
    %v72 = vld [vmem:[%s3] sm:$0x3]
    %s73 = sld [smem:[#allocation2]]
    %v74 = vld [vmem:[%s4] sm:$0xff]
    %v75 = vld [vmem:[%s4 + $0x8] sm:$0xff]
    %v76 = vld [vmem:[%s4 + $0x10] sm:$0xff]
    %v77 = vld [vmem:[%s4 + $0x18] sm:$0xff]
    %v78 = vld [vmem:[%s4 + $0x20] sm:$0xff]
    %v79 = vld [vmem:[%s4 + $0x28] sm:$0xff]
    %v80 = vld [vmem:[%s4 + $0x30] sm:$0xff]
    %v81 = vld [vmem:[%s4 + $0x38] sm:$0xff]
    %vm82 = vcmask 523264
    %v84 = vsel %vm82, %v38, 0
    %v87 = vsel %vm82, %v39, 0
    %v90 = vsel %vm82, %v40, 0
    %v93 = vsel %vm82, %v41, 0
    %v96 = vsel %vm82, %v42, 0
    %v99 = vsel %vm82, %v43, 0
    %v102 = vsel %vm82, %v44, 0
    %v105 = vsel %vm82, %v45, 0
    %v108 = vsel %vm82, %v46, 0
    %v111 = vsel %vm82, %v47, 0
    %v114 = vsel %vm82, %v48, 0
    %v117 = vsel %vm82, %v49, 0
    %v120 = vsel %vm82, %v50, 0
    %v123 = vsel %vm82, %v51, 0
    %v126 = vsel %vm82, %v52, 0
    %v129 = vsel %vm82, %v53, 0
    %v132 = vsel %vm82, %v54, 0
    %v135 = vsel %vm82, %v55, 0
    %v138 = vsel %vm82, %v56, 0
    %v141 = vsel %vm82, %v57, 0
    %v144 = vsel %vm82, %v58, 0
    %v147 = vsel %vm82, %v59, 0
    %v150 = vsel %vm82, %v60, 0
    %v153 = vsel %vm82, %v61, 0
    %v156 = vsel %vm82, %v62, 0
    %v159 = vsel %vm82, %v63, 0
    %v162 = vsel %vm82, %v64, 0
    %v165 = vsel %vm82, %v65, 0
    %v168 = vsel %vm82, %v66, 0
    %v171 = vsel %vm82, %v67, 0
    %v174 = vsel %vm82, %v68, 0
    %v177 = vsel %vm82, %v69, 0
    %179 = vmatprep.subr.mxu0 0.0
    %180 = vmatpush1.msra.mxu0 0.0
    %181 = vmatprep.subr.mxu0 0.0
    %182 = vmatpush1.msra.mxu0 0.0
    %183 = vmatprep.subr.mxu0 0.0
    %184 = vmatpush1.msra.mxu0 0.0
    %185 = vmatprep.subr.mxu0 0.0
    %186 = vmatpush1.msra.mxu0 0.0
    %187 = vmatprep.subr.mxu0 0.0
    %188 = vmatpush1.msra.mxu0 0.0
    %189 = vmatprep.subr.mxu0 0.0
    %190 = vmatpush1.msra.mxu0 0.0
    %191 = vmatprep.subr.mxu0 0.0
    %192 = vmatpush1.msra.mxu0 0.0
    %193 = vmatprep.subr.mxu0 0.0
    %194 = vmatpush1.msra.mxu0 0.0
    %195 = vmatprep.subr.mxu0 0.0
    %196 = vmatpush1.msra.mxu0 %v81
    %197 = vmatprep.subr.mxu0 0.0
    %198 = vmatpush1.msra.mxu0 %v80
    %199 = vmatprep.subr.mxu0 0.0
    %200 = vmatpush1.msra.mxu0 %v79
    %201 = vmatprep.subr.mxu0 0.0
    %202 = vmatpush1.msra.mxu0 %v78
    %203 = vmatprep.subr.mxu0 0.0
    %204 = vmatpush1.msra.mxu0 %v77
    %205 = vmatprep.subr.mxu0 0.0
    %206 = vmatpush1.msra.mxu0 %v76
    %207 = vmatprep.subr.mxu0 0.0
    %208 = vmatpush1.msra.mxu0 %v75
    %209 = vmatprep.subr.mxu0 0.0
    %210 = vmatpush1.msra.mxu0 %v74
    %211 = vmatprep.subr.mxu0 0.0
    %212 = vmatpush2.msra.mxu0 0.0
    %213 = vmatprep.subr.mxu0 0.0
    %214 = vmatpush2.msra.mxu0 0.0
    %215 = vmatprep.subr.mxu0 0.0
    %216 = vmatpush2.msra.mxu0 0.0
    %217 = vmatprep.subr.mxu0 0.0
    %218 = vmatpush2.msra.mxu0 0.0
    %219 = vmatprep.subr.mxu0 0.0
    %220 = vmatpush2.msra.mxu0 0.0
    %221 = vmatprep.subr.mxu0 0.0
    %222 = vmatpush2.msra.mxu0 0.0
    %223 = vmatprep.subr.mxu0 0.0
    %224 = vmatpush2.msra.mxu0 0.0
    %225 = vmatprep.subr.mxu0 0.0
    %226 = vmatpush2.msra.mxu0 0.0
    %227 = vmatprep.subr.mxu0 0.0
    %228 = vmatpush2.msra.mxu0 0.0
    %229 = vmatprep.subr.mxu0 0.0
    %230 = vmatpush2.msra.mxu0 0.0
    %231 = vmatprep.subr.mxu0 0.0
    %232 = vmatpush2.msra.mxu0 0.0
    %233 = vmatprep.subr.mxu0 0.0
    %234 = vmatpush2.msra.mxu0 0.0
    %235 = vmatprep.subr.mxu0 0.0
    %236 = vmatpush2.msra.mxu0 0.0
    %237 = vmatprep.subr.mxu0 0.0
    %238 = vmatpush2.msra.mxu0 0.0
    %239 = vmatprep.subr.mxu0 0.0
    %240 = vmatpush2.msra.mxu0 0.0
    %241 = vmatprep.subr.mxu0 0.0
    %242 = vmatpush2.msra.mxu0 0.0
    %243 = vmatprep.mubr.f32.mxu0 0.0
    %244 = vmatmul.mubr.f32.gmra.mxu0 %v84
    %v245 = vpop.f32.mrf.mxu0
    %v246 = vadd.f32 0.0, %v245
    %v247 = vpop.f32.mrf.mxu0
    %248 = vmatprep.mubr.f32.mxu0 0.0
    %249 = vmatmul.mubr.f32.gmra.mxu0 %v87
    %v250 = vpop.f32.mrf.mxu0
    %v251 = vadd.f32 0.0, %v250
    %v252 = vpop.f32.mrf.mxu0
    %253 = vmatprep.mubr.f32.mxu0 0.0
    %254 = vmatmul.mubr.f32.gmra.mxu0 %v90
    %v255 = vpop.f32.mrf.mxu0
    %v256 = vadd.f32 0.0, %v255
    %v257 = vpop.f32.mrf.mxu0
    %258 = vmatprep.mubr.f32.mxu0 0.0
    %259 = vmatmul.mubr.f32.gmra.mxu0 %v93
    %v260 = vpop.f32.mrf.mxu0
    %v261 = vadd.f32 0.0, %v260
    %v262 = vpop.f32.mrf.mxu0
    %263 = vmatprep.mubr.f32.mxu0 0.0
    %264 = vmatmul.mubr.f32.gmra.mxu0 %v96
    %v265 = vpop.f32.mrf.mxu0
    %v266 = vadd.f32 0.0, %v265
    %v267 = vpop.f32.mrf.mxu0
    %268 = vmatprep.mubr.f32.mxu0 0.0
    %269 = vmatmul.mubr.f32.gmra.mxu0 %v99
    %v270 = vpop.f32.mrf.mxu0
    %v271 = vadd.f32 0.0, %v270
    %v272 = vpop.f32.mrf.mxu0
    %273 = vmatprep.mubr.f32.mxu0 0.0
    %274 = vmatmul.mubr.f32.gmra.mxu0 %v102
    %v275 = vpop.f32.mrf.mxu0
    %v276 = vadd.f32 0.0, %v275
    %v277 = vpop.f32.mrf.mxu0
    %278 = vmatprep.mubr.f32.mxu0 0.0
    %279 = vmatmul.mubr.f32.gmra.mxu0 %v105
    %v280 = vpop.f32.mrf.mxu0
    %v281 = vadd.f32 0.0, %v280
    %v282 = vpop.f32.mrf.mxu0
    %283 = vmatprep.mubr.f32.mxu0 0.0
    %284 = vmatmul.mubr.f32.gmra.mxu0 %v108
    %v285 = vpop.f32.mrf.mxu0
    %v286 = vadd.f32 0.0, %v285
    %v287 = vpop.f32.mrf.mxu0
    %288 = vmatprep.mubr.f32.mxu0 0.0
    %289 = vmatmul.mubr.f32.gmra.mxu0 %v111
    %v290 = vpop.f32.mrf.mxu0
    %v291 = vadd.f32 0.0, %v290
    %v292 = vpop.f32.mrf.mxu0
    %293 = vmatprep.mubr.f32.mxu0 0.0
    %294 = vmatmul.mubr.f32.gmra.mxu0 %v114
    %v295 = vpop.f32.mrf.mxu0
    %v296 = vadd.f32 0.0, %v295
    %v297 = vpop.f32.mrf.mxu0
    %298 = vmatprep.mubr.f32.mxu0 0.0
    %299 = vmatmul.mubr.f32.gmra.mxu0 %v117
    %v300 = vpop.f32.mrf.mxu0
    %v301 = vadd.f32 0.0, %v300
    %v302 = vpop.f32.mrf.mxu0
    %303 = vmatprep.mubr.f32.mxu0 0.0
    %304 = vmatmul.mubr.f32.gmra.mxu0 %v120
    %v305 = vpop.f32.mrf.mxu0
    %v306 = vadd.f32 0.0, %v305
    %v307 = vpop.f32.mrf.mxu0
    %308 = vmatprep.mubr.f32.mxu0 0.0
    %309 = vmatmul.mubr.f32.gmra.mxu0 %v123
    %v310 = vpop.f32.mrf.mxu0
    %v311 = vadd.f32 0.0, %v310
    %v312 = vpop.f32.mrf.mxu0
    %313 = vmatprep.mubr.f32.mxu0 0.0
    %314 = vmatmul.mubr.f32.gmra.mxu0 %v126
    %v315 = vpop.f32.mrf.mxu0
    %v316 = vadd.f32 0.0, %v315
    %v317 = vpop.f32.mrf.mxu0
    %318 = vmatprep.mubr.f32.mxu0 0.0
    %319 = vmatmul.mubr.f32.gmra.mxu0 %v129
    %v320 = vpop.f32.mrf.mxu0
    %v321 = vadd.f32 0.0, %v320
    %v322 = vpop.f32.mrf.mxu0
    %323 = vmatprep.mubr.f32.mxu0 0.0
    %324 = vmatmul.mubr.f32.gmra.mxu0 %v132
    %v325 = vpop.f32.mrf.mxu0
    %v326 = vadd.f32 0.0, %v325
    %v327 = vpop.f32.mrf.mxu0
    %328 = vmatprep.mubr.f32.mxu0 0.0
    %329 = vmatmul.mubr.f32.gmra.mxu0 %v135
    %v330 = vpop.f32.mrf.mxu0
    %v331 = vadd.f32 0.0, %v330
    %v332 = vpop.f32.mrf.mxu0
    %333 = vmatprep.mubr.f32.mxu0 0.0
    %334 = vmatmul.mubr.f32.gmra.mxu0 %v138
    %v335 = vpop.f32.mrf.mxu0
    %v336 = vadd.f32 0.0, %v335
    %v337 = vpop.f32.mrf.mxu0
    %338 = vmatprep.mubr.f32.mxu0 0.0
    %339 = vmatmul.mubr.f32.gmra.mxu0 %v141
    %v340 = vpop.f32.mrf.mxu0
    %v341 = vadd.f32 0.0, %v340
    %v342 = vpop.f32.mrf.mxu0
    %343 = vmatprep.mubr.f32.mxu0 0.0
    %344 = vmatmul.mubr.f32.gmra.mxu0 %v144
    %v345 = vpop.f32.mrf.mxu0
    %v346 = vadd.f32 0.0, %v345
    %v347 = vpop.f32.mrf.mxu0
    %348 = vmatprep.mubr.f32.mxu0 0.0
    %349 = vmatmul.mubr.f32.gmra.mxu0 %v147
    %v350 = vpop.f32.mrf.mxu0
    %v351 = vadd.f32 0.0, %v350
    %v352 = vpop.f32.mrf.mxu0
    %353 = vmatprep.mubr.f32.mxu0 0.0
    %354 = vmatmul.mubr.f32.gmra.mxu0 %v150
    %v355 = vpop.f32.mrf.mxu0
    %v356 = vadd.f32 0.0, %v355
    %v357 = vpop.f32.mrf.mxu0
    %358 = vmatprep.mubr.f32.mxu0 0.0
    %359 = vmatmul.mubr.f32.gmra.mxu0 %v153
    %v360 = vpop.f32.mrf.mxu0
    %v361 = vadd.f32 0.0, %v360
    %v362 = vpop.f32.mrf.mxu0
    %363 = vmatprep.mubr.f32.mxu0 0.0
    %364 = vmatmul.mubr.f32.gmra.mxu0 %v156
    %v365 = vpop.f32.mrf.mxu0
    %v366 = vadd.f32 0.0, %v365
    %v367 = vpop.f32.mrf.mxu0
    %368 = vmatprep.mubr.f32.mxu0 0.0
    %369 = vmatmul.mubr.f32.gmra.mxu0 %v159
    %v370 = vpop.f32.mrf.mxu0
    %v371 = vadd.f32 0.0, %v370
    %v372 = vpop.f32.mrf.mxu0
    %373 = vmatprep.mubr.f32.mxu0 0.0
    %374 = vmatmul.mubr.f32.gmra.mxu0 %v162
    %v375 = vpop.f32.mrf.mxu0
    %v376 = vadd.f32 0.0, %v375
    %v377 = vpop.f32.mrf.mxu0
    %378 = vmatprep.mubr.f32.mxu0 0.0
    %379 = vmatmul.mubr.f32.gmra.mxu0 %v165
    %v380 = vpop.f32.mrf.mxu0
    %v381 = vadd.f32 0.0, %v380
    %v382 = vpop.f32.mrf.mxu0
    %383 = vmatprep.mubr.f32.mxu0 0.0
    %384 = vmatmul.mubr.f32.gmra.mxu0 %v168
    %v385 = vpop.f32.mrf.mxu0
    %v386 = vadd.f32 0.0, %v385
    %v387 = vpop.f32.mrf.mxu0
    %388 = vmatprep.mubr.f32.mxu0 0.0
    %389 = vmatmul.mubr.f32.gmra.mxu0 %v171
    %v390 = vpop.f32.mrf.mxu0
    %v391 = vadd.f32 0.0, %v390
    %v392 = vpop.f32.mrf.mxu0
    %393 = vmatprep.mubr.f32.mxu0 0.0
    %394 = vmatmul.mubr.f32.gmra.mxu0 %v174
    %v395 = vpop.f32.mrf.mxu0
    %v396 = vadd.f32 0.0, %v395
    %v397 = vpop.f32.mrf.mxu0
    %398 = vmatprep.mubr.f32.mxu0 0.0
    %399 = vmatmul.mubr.f32.gmra.mxu0 %v177
    %v400 = vpop.f32.mrf.mxu0
    %v401 = vadd.f32 0.0, %v400
    %v402 = vpop.f32.mrf.mxu0
    %403 = vdwg.mxu0
    %v404 = vld [vmem:[%s5] sm:$0xff]
    %v405 = vld [vmem:[%s5 + $0x8] sm:$0xff]
    %v406 = vld [vmem:[%s5 + $0x10] sm:$0xff]
    %v407 = vld [vmem:[%s5 + $0x18] sm:$0xff]
    %vm408 = vcmask 261120
    %v410 = vsel %vm408, %v70, 0
    %412 = vmatprep.subr.mxu0 0.0
    %413 = vmatpush1.msra.mxu0 0.0
    %414 = vmatprep.subr.mxu0 0.0
    %415 = vmatpush1.msra.mxu0 0.0
    %416 = vmatprep.subr.mxu0 0.0
    %417 = vmatpush1.msra.mxu0 0.0
    %418 = vmatprep.subr.mxu0 0.0
    %419 = vmatpush1.msra.mxu0 0.0
    %420 = vmatprep.subr.mxu0 0.0
    %421 = vmatpush1.msra.mxu0 0.0
    %422 = vmatprep.subr.mxu0 0.0
    %423 = vmatpush1.msra.mxu0 0.0
    %424 = vmatprep.subr.mxu0 0.0
    %425 = vmatpush1.msra.mxu0 0.0
    %426 = vmatprep.subr.mxu0 0.0
    %427 = vmatpush1.msra.mxu0 0.0
    %428 = vmatprep.subr.mxu0 0.0
    %429 = vmatpush1.msra.mxu0 0.0
    %430 = vmatprep.subr.mxu0 0.0
    %431 = vmatpush1.msra.mxu0 0.0
    %432 = vmatprep.subr.mxu0 0.0
    %433 = vmatpush1.msra.mxu0 0.0
    %434 = vmatprep.subr.mxu0 0.0
    %435 = vmatpush1.msra.mxu0 0.0
    %436 = vmatprep.subr.mxu0 0.0
    %437 = vmatpush1.msra.mxu0 %v407
    %438 = vmatprep.subr.mxu0 0.0
    %439 = vmatpush1.msra.mxu0 %v406
    %440 = vmatprep.subr.mxu0 0.0
    %441 = vmatpush1.msra.mxu0 %v405
    %442 = vmatprep.subr.mxu0 0.0
    %443 = vmatpush1.msra.mxu0 %v404
    %444 = vmatprep.subr.mxu0 0.0
    %445 = vmatpush2.msra.mxu0 0.0
    %446 = vmatprep.subr.mxu0 0.0
    %447 = vmatpush2.msra.mxu0 0.0
    %448 = vmatprep.subr.mxu0 0.0
    %449 = vmatpush2.msra.mxu0 0.0
    %450 = vmatprep.subr.mxu0 0.0
    %451 = vmatpush2.msra.mxu0 0.0
    %452 = vmatprep.subr.mxu0 0.0
    %453 = vmatpush2.msra.mxu0 0.0
    %454 = vmatprep.subr.mxu0 0.0
    %455 = vmatpush2.msra.mxu0 0.0
    %456 = vmatprep.subr.mxu0 0.0
    %457 = vmatpush2.msra.mxu0 0.0
    %458 = vmatprep.subr.mxu0 0.0
    %459 = vmatpush2.msra.mxu0 0.0
    %460 = vmatprep.subr.mxu0 0.0
    %461 = vmatpush2.msra.mxu0 0.0
    %462 = vmatprep.subr.mxu0 0.0
    %463 = vmatpush2.msra.mxu0 0.0
    %464 = vmatprep.subr.mxu0 0.0
    %465 = vmatpush2.msra.mxu0 0.0
    %466 = vmatprep.subr.mxu0 0.0
    %467 = vmatpush2.msra.mxu0 0.0
    %468 = vmatprep.subr.mxu0 0.0
    %469 = vmatpush2.msra.mxu0 0.0
    %470 = vmatprep.subr.mxu0 0.0
    %471 = vmatpush2.msra.mxu0 0.0
    %472 = vmatprep.subr.mxu0 0.0
    %473 = vmatpush2.msra.mxu0 0.0
    %474 = vmatprep.subr.mxu0 0.0
    %475 = vmatpush2.msra.mxu0 0.0
    %476 = vmatprep.mubr.f32.mxu0 0.0
    %477 = vmatmul.mubr.f32.gmra.mxu0 %v410
    %v478 = vpop.f32.mrf.mxu0
    %v479 = vadd.f32 0.0, %v478
    %v480 = vpop.f32.mrf.mxu0
    %481 = vdwg.mxu0
    %v482 = vld [vmem:[%s6] sm:$0x1]
    %v483 = vlaneseq
    %v484 = vshrl.u32 %v483, 7
    %v485 = vsub.s32 0, %v484
    %v486 = vrot.slane %v71, %v485
    %488 = vbcast.lane.b32.xlu0 %v486, 256
    %v489 = vpop.permute.xlu0 %488
    %s491 = sor.u32 256, 8
    %492 = vbcast.lane.b32.xlu0 %v486, %s491
    %v493 = vpop.permute.xlu0 %492
    %s495 = sor.u32 256, 16
    %496 = vbcast.lane.b32.xlu0 %v486, %s495
    %v497 = vpop.permute.xlu0 %496
    %s499 = sor.u32 256, 24
    %500 = vbcast.lane.b32.xlu0 %v486, %s499
    %v501 = vpop.permute.xlu0 %500
    %s503 = sor.u32 256, 32
    %504 = vbcast.lane.b32.xlu0 %v486, %s503
    %v505 = vpop.permute.xlu0 %504
    %s507 = sor.u32 256, 40
    %508 = vbcast.lane.b32.xlu0 %v486, %s507
    %v509 = vpop.permute.xlu0 %508
    %s511 = sor.u32 256, 48
    %512 = vbcast.lane.b32.xlu0 %v486, %s511
    %v513 = vpop.permute.xlu0 %512
    %s515 = sor.u32 256, 56
    %516 = vbcast.lane.b32.xlu0 %v486, %s515
    %v517 = vpop.permute.xlu0 %516
    %s519 = sor.u32 256, 64
    %520 = vbcast.lane.b32.xlu0 %v486, %s519
    %v521 = vpop.permute.xlu0 %520
    %s523 = sor.u32 256, 72
    %524 = vbcast.lane.b32.xlu0 %v486, %s523
    %v525 = vpop.permute.xlu0 %524
    %s527 = sor.u32 256, 80
    %528 = vbcast.lane.b32.xlu0 %v486, %s527
    %v529 = vpop.permute.xlu0 %528
    %s531 = sor.u32 256, 88
    %532 = vbcast.lane.b32.xlu0 %v486, %s531
    %v533 = vpop.permute.xlu0 %532
    %s535 = sor.u32 256, 96
    %536 = vbcast.lane.b32.xlu0 %v486, %s535
    %v537 = vpop.permute.xlu0 %536
    %s539 = sor.u32 256, 104
    %540 = vbcast.lane.b32.xlu0 %v486, %s539
    %v541 = vpop.permute.xlu0 %540
    %s543 = sor.u32 256, 112
    %544 = vbcast.lane.b32.xlu0 %v486, %s543
    %v545 = vpop.permute.xlu0 %544
    %s547 = sor.u32 256, 120
    %548 = vbcast.lane.b32.xlu0 %v486, %s547
    %v549 = vpop.permute.xlu0 %548
    %v550 = vlaneseq
    %v551 = vshrl.u32 %v550, 7
    %v552 = vsub.s32 1, %v551
    %v553 = vrot.slane %v71, %v552
    %555 = vbcast.lane.b32.xlu0 %v553, 256
    %v556 = vpop.permute.xlu0 %555
    %s558 = sor.u32 256, 8
    %559 = vbcast.lane.b32.xlu0 %v553, %s558
    %v560 = vpop.permute.xlu0 %559
    %s562 = sor.u32 256, 16
    %563 = vbcast.lane.b32.xlu0 %v553, %s562
    %v564 = vpop.permute.xlu0 %563
    %s566 = sor.u32 256, 24
    %567 = vbcast.lane.b32.xlu0 %v553, %s566
    %v568 = vpop.permute.xlu0 %567
    %s570 = sor.u32 256, 32
    %571 = vbcast.lane.b32.xlu0 %v553, %s570
    %v572 = vpop.permute.xlu0 %571
    %s574 = sor.u32 256, 40
    %575 = vbcast.lane.b32.xlu0 %v553, %s574
    %v576 = vpop.permute.xlu0 %575
    %s578 = sor.u32 256, 48
    %579 = vbcast.lane.b32.xlu0 %v553, %s578
    %v580 = vpop.permute.xlu0 %579
    %s582 = sor.u32 256, 56
    %583 = vbcast.lane.b32.xlu0 %v553, %s582
    %v584 = vpop.permute.xlu0 %583
    %s586 = sor.u32 256, 64
    %587 = vbcast.lane.b32.xlu0 %v553, %s586
    %v588 = vpop.permute.xlu0 %587
    %s590 = sor.u32 256, 72
    %591 = vbcast.lane.b32.xlu0 %v553, %s590
    %v592 = vpop.permute.xlu0 %591
    %s594 = sor.u32 256, 80
    %595 = vbcast.lane.b32.xlu0 %v553, %s594
    %v596 = vpop.permute.xlu0 %595
    %s598 = sor.u32 256, 88
    %599 = vbcast.lane.b32.xlu0 %v553, %s598
    %v600 = vpop.permute.xlu0 %599
    %s602 = sor.u32 256, 96
    %603 = vbcast.lane.b32.xlu0 %v553, %s602
    %v604 = vpop.permute.xlu0 %603
    %s606 = sor.u32 256, 104
    %607 = vbcast.lane.b32.xlu0 %v553, %s606
    %v608 = vpop.permute.xlu0 %607
    %s610 = sor.u32 256, 112
    %611 = vbcast.lane.b32.xlu0 %v553, %s610
    %v612 = vpop.permute.xlu0 %611
    %s614 = sor.u32 256, 120
    %615 = vbcast.lane.b32.xlu0 %v553, %s614
    %v616 = vpop.permute.xlu0 %615
    %v618 = vlaneseq
    %v619 = vshrl.u32 %v618, 7
    %v620 = vsub.s32 0, %v619
    %v621 = vrot.slane %v482, %v620
    %v623 = vmul.f32 %v489, %v621
    %v624 = vmul.f32 %v493, %v621
    %v625 = vmul.f32 %v497, %v621
    %v626 = vmul.f32 %v501, %v621
    %v627 = vmul.f32 %v505, %v621
    %v628 = vmul.f32 %v509, %v621
    %v629 = vmul.f32 %v513, %v621
    %v630 = vmul.f32 %v517, %v621
    %v631 = vmul.f32 %v521, %v621
    %v632 = vmul.f32 %v525, %v621
    %v633 = vmul.f32 %v529, %v621
    %v634 = vmul.f32 %v533, %v621
    %v635 = vmul.f32 %v537, %v621
    %v636 = vmul.f32 %v541, %v621
    %v637 = vmul.f32 %v545, %v621
    %v638 = vmul.f32 %v549, %v621
    %v639 = vmul.f32 %v556, %v621
    %v640 = vmul.f32 %v560, %v621
    %v641 = vmul.f32 %v564, %v621
    %v642 = vmul.f32 %v568, %v621
    %v643 = vmul.f32 %v572, %v621
    %v644 = vmul.f32 %v576, %v621
    %v645 = vmul.f32 %v580, %v621
    %v646 = vmul.f32 %v584, %v621
    %v647 = vmul.f32 %v588, %v621
    %v648 = vmul.f32 %v592, %v621
    %v649 = vmul.f32 %v596, %v621
    %v650 = vmul.f32 %v600, %v621
    %v651 = vmul.f32 %v604, %v621
    %v652 = vmul.f32 %v608, %v621
    %v653 = vmul.f32 %v612, %v621
    %v654 = vmul.f32 %v616, %v621
    %v657 = vunpack.c.l.s4 1966171168
    %v658 = vunpack.c.0.s8 %v657
    %v659 = vlaneseq
    %v660 = vshrl.u32 %v659, 7
    %v661 = vsub.s32 %v658, %v660
    %v662 = vrot.slane %v479, %v661
    %v663 = vcombine.high %v662, %v662
    %v665 = vunpack.c.l.s4 1966171168
    %v666 = vunpack.c.0.s8 %v665
    %v667 = vlaneseq
    %v668 = vshrl.u32 %v667, 7
    %v669 = vsub.s32 %v666, %v668
    %v670 = vrot.slane %v662, %v669
    %v672 = vunpack.c.l.s4 1966171168
    %v673 = vunpack.c.0.s8 %v672
    %v674 = vlaneseq
    %v675 = vshrl.u32 %v674, 7
    %v676 = vsub.s32 %v673, %v675
    %v677 = vrot.slane %v663, %v676
    %v678 = vlaneseq
    %v679 = vshrl.u32 %v678, 7
    %v680 = vsub.s32 0, %v679
    %v681 = vrot.slane %v670, %v680
    %v682 = vlaneseq
    %v683 = vshrl.u32 %v682, 7
    %v684 = vsub.s32 0, %v683
    %v685 = vrot.slane %v677, %v684
    %v688 = vadd.f32 %v246, %v681
    %v689 = vadd.f32 %v251, %v681
    %v690 = vadd.f32 %v256, %v681
    %v691 = vadd.f32 %v261, %v681
    %v692 = vadd.f32 %v266, %v681
    %v693 = vadd.f32 %v271, %v681
    %v694 = vadd.f32 %v276, %v681
    %v695 = vadd.f32 %v281, %v681
    %v696 = vadd.f32 %v286, %v681
    %v697 = vadd.f32 %v291, %v681
    %v698 = vadd.f32 %v296, %v681
    %v699 = vadd.f32 %v301, %v681
    %v700 = vadd.f32 %v306, %v681
    %v701 = vadd.f32 %v311, %v681
    %v702 = vadd.f32 %v316, %v681
    %v703 = vadd.f32 %v321, %v681
    %v704 = vadd.f32 %v326, %v685
    %v705 = vadd.f32 %v331, %v685
    %v706 = vadd.f32 %v336, %v685
    %v707 = vadd.f32 %v341, %v685
    %v708 = vadd.f32 %v346, %v685
    %v709 = vadd.f32 %v351, %v685
    %v710 = vadd.f32 %v356, %v685
    %v711 = vadd.f32 %v361, %v685
    %v712 = vadd.f32 %v366, %v685
    %v713 = vadd.f32 %v371, %v685
    %v714 = vadd.f32 %v376, %v685
    %v715 = vadd.f32 %v381, %v685
    %v716 = vadd.f32 %v386, %v685
    %v717 = vadd.f32 %v391, %v685
    %v718 = vadd.f32 %v396, %v685
    %v719 = vadd.f32 %v401, %v685
    %v720 = vadd.f32 %v688, %v623
    %v721 = vadd.f32 %v689, %v624
    %v722 = vadd.f32 %v690, %v625
    %v723 = vadd.f32 %v691, %v626
    %v724 = vadd.f32 %v692, %v627
    %v725 = vadd.f32 %v693, %v628
    %v726 = vadd.f32 %v694, %v629
    %v727 = vadd.f32 %v695, %v630
    %v728 = vadd.f32 %v696, %v631
    %v729 = vadd.f32 %v697, %v632
    %v730 = vadd.f32 %v698, %v633
    %v731 = vadd.f32 %v699, %v634
    %v732 = vadd.f32 %v700, %v635
    %v733 = vadd.f32 %v701, %v636
    %v734 = vadd.f32 %v702, %v637
    %v735 = vadd.f32 %v703, %v638
    %v736 = vadd.f32 %v704, %v639
    %v737 = vadd.f32 %v705, %v640
    %v738 = vadd.f32 %v706, %v641
    %v739 = vadd.f32 %v707, %v642
    %v740 = vadd.f32 %v708, %v643
    %v741 = vadd.f32 %v709, %v644
    %v742 = vadd.f32 %v710, %v645
    %v743 = vadd.f32 %v711, %v646
    %v744 = vadd.f32 %v712, %v647
    %v745 = vadd.f32 %v713, %v648
    %v746 = vadd.f32 %v714, %v649
    %v747 = vadd.f32 %v715, %v650
    %v748 = vadd.f32 %v716, %v651
    %v749 = vadd.f32 %v717, %v652
    %v750 = vadd.f32 %v718, %v653
    %v751 = vadd.f32 %v719, %v654
    %v752 = vstv %s73
    %v753 = vadd.f32 %v720, %v752
    %v754 = vadd.f32 %v721, %v752
    %v755 = vadd.f32 %v722, %v752
    %v756 = vadd.f32 %v723, %v752
    %v757 = vadd.f32 %v724, %v752
    %v758 = vadd.f32 %v725, %v752
    %v759 = vadd.f32 %v726, %v752
    %v760 = vadd.f32 %v727, %v752
    %v761 = vadd.f32 %v728, %v752
    %v762 = vadd.f32 %v729, %v752
    %v763 = vadd.f32 %v730, %v752
    %v764 = vadd.f32 %v731, %v752
    %v765 = vadd.f32 %v732, %v752
    %v766 = vadd.f32 %v733, %v752
    %v767 = vadd.f32 %v734, %v752
    %v768 = vadd.f32 %v735, %v752
    %v769 = vadd.f32 %v736, %v752
    %v770 = vadd.f32 %v737, %v752
    %v771 = vadd.f32 %v738, %v752
    %v772 = vadd.f32 %v739, %v752
    %v773 = vadd.f32 %v740, %v752
    %v774 = vadd.f32 %v741, %v752
    %v775 = vadd.f32 %v742, %v752
    %v776 = vadd.f32 %v743, %v752
    %v777 = vadd.f32 %v744, %v752
    %v778 = vadd.f32 %v745, %v752
    %v779 = vadd.f32 %v746, %v752
    %v780 = vadd.f32 %v747, %v752
    %v781 = vadd.f32 %v748, %v752
    %v782 = vadd.f32 %v749, %v752
    %v783 = vadd.f32 %v750, %v752
    %v784 = vadd.f32 %v751, %v752
    %v785 = vtanh.pop %v753
    %v786 = vtanh.pop %v754
    %v787 = vtanh.pop %v755
    %v788 = vtanh.pop %v756
    %v789 = vtanh.pop %v757
    %v790 = vtanh.pop %v758
    %v791 = vtanh.pop %v759
    %v792 = vtanh.pop %v760
    %v793 = vtanh.pop %v761
    %v794 = vtanh.pop %v762
    %v795 = vtanh.pop %v763
    %v796 = vtanh.pop %v764
    %v797 = vtanh.pop %v765
    %v798 = vtanh.pop %v766
    %v799 = vtanh.pop %v767
    %v800 = vtanh.pop %v768
    %v801 = vtanh.pop %v769
    %v802 = vtanh.pop %v770
    %v803 = vtanh.pop %v771
    %v804 = vtanh.pop %v772
    %v805 = vtanh.pop %v773
    %v806 = vtanh.pop %v774
    %v807 = vtanh.pop %v775
    %v808 = vtanh.pop %v776
    %v809 = vtanh.pop %v777
    %v810 = vtanh.pop %v778
    %v811 = vtanh.pop %v779
    %v812 = vtanh.pop %v780
    %v813 = vtanh.pop %v781
    %v814 = vtanh.pop %v782
    %v815 = vtanh.pop %v783
    %v816 = vtanh.pop %v784
    %v817 = vld [vmem:[%s7] sm:$0x1]
    %v819 = vlaneseq
    %v820 = vshrl.u32 %v819, 7
    %v821 = vsub.s32 0, %v820
    %v822 = vrot.slane %v817, %v821
    %v824 = vmul.f32 %v785, %v822
    %v825 = vmul.f32 %v786, %v822
    %v826 = vmul.f32 %v787, %v822
    %v827 = vmul.f32 %v788, %v822
    %v828 = vmul.f32 %v789, %v822
    %v829 = vmul.f32 %v790, %v822
    %v830 = vmul.f32 %v791, %v822
    %v831 = vmul.f32 %v792, %v822
    %v832 = vmul.f32 %v793, %v822
    %v833 = vmul.f32 %v794, %v822
    %v834 = vmul.f32 %v795, %v822
    %v835 = vmul.f32 %v796, %v822
    %v836 = vmul.f32 %v797, %v822
    %v837 = vmul.f32 %v798, %v822
    %v838 = vmul.f32 %v799, %v822
    %v839 = vmul.f32 %v800, %v822
    %v840 = vmul.f32 %v801, %v822
    %v841 = vmul.f32 %v802, %v822
    %v842 = vmul.f32 %v803, %v822
    %v843 = vmul.f32 %v804, %v822
    %v844 = vmul.f32 %v805, %v822
    %v845 = vmul.f32 %v806, %v822
    %v846 = vmul.f32 %v807, %v822
    %v847 = vmul.f32 %v808, %v822
    %v848 = vmul.f32 %v809, %v822
    %v849 = vmul.f32 %v810, %v822
    %v850 = vmul.f32 %v811, %v822
    %v851 = vmul.f32 %v812, %v822
    %v852 = vmul.f32 %v813, %v822
    %v853 = vmul.f32 %v814, %v822
    %v854 = vmul.f32 %v815, %v822
    %v855 = vmul.f32 %v816, %v822
    %v856 = vsel %vm408, %v824, 0.0
    %857 = vadd.xlane.f32.xlu0 %v856
    %v858 = vpop.xlane.xlu0 %857
    %v859 = vsel %vm408, %v825, 0.0
    %860 = vadd.xlane.f32.xlu0 %v859
    %v861 = vpop.xlane.xlu0 %860
    %v862 = vsel %vm408, %v826, 0.0
    %863 = vadd.xlane.f32.xlu0 %v862
    %v864 = vpop.xlane.xlu0 %863
    %v865 = vsel %vm408, %v827, 0.0
    %866 = vadd.xlane.f32.xlu0 %v865
    %v867 = vpop.xlane.xlu0 %866
    %v868 = vsel %vm408, %v828, 0.0
    %869 = vadd.xlane.f32.xlu0 %v868
    %v870 = vpop.xlane.xlu0 %869
    %v871 = vsel %vm408, %v829, 0.0
    %872 = vadd.xlane.f32.xlu0 %v871
    %v873 = vpop.xlane.xlu0 %872
    %v874 = vsel %vm408, %v830, 0.0
    %875 = vadd.xlane.f32.xlu0 %v874
    %v876 = vpop.xlane.xlu0 %875
    %v877 = vsel %vm408, %v831, 0.0
    %878 = vadd.xlane.f32.xlu0 %v877
    %v879 = vpop.xlane.xlu0 %878
    %v880 = vsel %vm408, %v832, 0.0
    %881 = vadd.xlane.f32.xlu0 %v880
    %v882 = vpop.xlane.xlu0 %881
    %v883 = vsel %vm408, %v833, 0.0
    %884 = vadd.xlane.f32.xlu0 %v883
    %v885 = vpop.xlane.xlu0 %884
    %v886 = vsel %vm408, %v834, 0.0
    %887 = vadd.xlane.f32.xlu0 %v886
    %v888 = vpop.xlane.xlu0 %887
    %v889 = vsel %vm408, %v835, 0.0
    %890 = vadd.xlane.f32.xlu0 %v889
    %v891 = vpop.xlane.xlu0 %890
    %v892 = vsel %vm408, %v836, 0.0
    %893 = vadd.xlane.f32.xlu0 %v892
    %v894 = vpop.xlane.xlu0 %893
    %v895 = vsel %vm408, %v837, 0.0
    %896 = vadd.xlane.f32.xlu0 %v895
    %v897 = vpop.xlane.xlu0 %896
    %v898 = vsel %vm408, %v838, 0.0
    %899 = vadd.xlane.f32.xlu0 %v898
    %v900 = vpop.xlane.xlu0 %899
    %v901 = vsel %vm408, %v839, 0.0
    %902 = vadd.xlane.f32.xlu0 %v901
    %v903 = vpop.xlane.xlu0 %902
    %v904 = vsel %vm408, %v840, 0.0
    %905 = vadd.xlane.f32.xlu0 %v904
    %v906 = vpop.xlane.xlu0 %905
    %v907 = vsel %vm408, %v841, 0.0
    %908 = vadd.xlane.f32.xlu0 %v907
    %v909 = vpop.xlane.xlu0 %908
    %v910 = vsel %vm408, %v842, 0.0
    %911 = vadd.xlane.f32.xlu0 %v910
    %v912 = vpop.xlane.xlu0 %911
    %v913 = vsel %vm408, %v843, 0.0
    %914 = vadd.xlane.f32.xlu0 %v913
    %v915 = vpop.xlane.xlu0 %914
    %v916 = vsel %vm408, %v844, 0.0
    %917 = vadd.xlane.f32.xlu0 %v916
    %v918 = vpop.xlane.xlu0 %917
    %v919 = vsel %vm408, %v845, 0.0
    %920 = vadd.xlane.f32.xlu0 %v919
    %v921 = vpop.xlane.xlu0 %920
    %v922 = vsel %vm408, %v846, 0.0
    %923 = vadd.xlane.f32.xlu0 %v922
    %v924 = vpop.xlane.xlu0 %923
    %v925 = vsel %vm408, %v847, 0.0
    %926 = vadd.xlane.f32.xlu0 %v925
    %v927 = vpop.xlane.xlu0 %926
    %v928 = vsel %vm408, %v848, 0.0
    %929 = vadd.xlane.f32.xlu0 %v928
    %v930 = vpop.xlane.xlu0 %929
    %v931 = vsel %vm408, %v849, 0.0
    %932 = vadd.xlane.f32.xlu0 %v931
    %v933 = vpop.xlane.xlu0 %932
    %v934 = vsel %vm408, %v850, 0.0
    %935 = vadd.xlane.f32.xlu0 %v934
    %v936 = vpop.xlane.xlu0 %935
    %v937 = vsel %vm408, %v851, 0.0
    %938 = vadd.xlane.f32.xlu0 %v937
    %v939 = vpop.xlane.xlu0 %938
    %v940 = vsel %vm408, %v852, 0.0
    %941 = vadd.xlane.f32.xlu0 %v940
    %v942 = vpop.xlane.xlu0 %941
    %v943 = vsel %vm408, %v853, 0.0
    %944 = vadd.xlane.f32.xlu0 %v943
    %v945 = vpop.xlane.xlu0 %944
    %v946 = vsel %vm408, %v854, 0.0
    %947 = vadd.xlane.f32.xlu0 %v946
    %v948 = vpop.xlane.xlu0 %947
    %v949 = vsel %vm408, %v855, 0.0
    %950 = vadd.xlane.f32.xlu0 %v949
    %v951 = vpop.xlane.xlu0 %950
    %v952 = vsub.f32 %v72, 1.0
    %v953 = vmul.f32 %v952, 1e+30
    %v955 = vlaneseq
    %v956 = vshrl.u32 %v955, 7
    %v957 = vsub.s32 0, %v956
    %v958 = vrot.slane %v953, %v957
    %960 = vbcast.lane.b32.xlu0 %v958, 256
    %v961 = vpop.permute.xlu0 %960
    %s963 = sor.u32 256, 8
    %964 = vbcast.lane.b32.xlu0 %v958, %s963
    %v965 = vpop.permute.xlu0 %964
    %s967 = sor.u32 256, 16
    %968 = vbcast.lane.b32.xlu0 %v958, %s967
    %v969 = vpop.permute.xlu0 %968
    %s971 = sor.u32 256, 24
    %972 = vbcast.lane.b32.xlu0 %v958, %s971
    %v973 = vpop.permute.xlu0 %972
    %s975 = sor.u32 256, 32
    %976 = vbcast.lane.b32.xlu0 %v958, %s975
    %v977 = vpop.permute.xlu0 %976
    %s979 = sor.u32 256, 40
    %980 = vbcast.lane.b32.xlu0 %v958, %s979
    %v981 = vpop.permute.xlu0 %980
    %s983 = sor.u32 256, 48
    %984 = vbcast.lane.b32.xlu0 %v958, %s983
    %v985 = vpop.permute.xlu0 %984
    %s987 = sor.u32 256, 56
    %988 = vbcast.lane.b32.xlu0 %v958, %s987
    %v989 = vpop.permute.xlu0 %988
    %s991 = sor.u32 256, 64
    %992 = vbcast.lane.b32.xlu0 %v958, %s991
    %v993 = vpop.permute.xlu0 %992
    %s995 = sor.u32 256, 72
    %996 = vbcast.lane.b32.xlu0 %v958, %s995
    %v997 = vpop.permute.xlu0 %996
    %s999 = sor.u32 256, 80
    %1000 = vbcast.lane.b32.xlu0 %v958, %s999
    %v1001 = vpop.permute.xlu0 %1000
    %s1003 = sor.u32 256, 88
    %1004 = vbcast.lane.b32.xlu0 %v958, %s1003
    %v1005 = vpop.permute.xlu0 %1004
    %s1007 = sor.u32 256, 96
    %1008 = vbcast.lane.b32.xlu0 %v958, %s1007
    %v1009 = vpop.permute.xlu0 %1008
    %s1011 = sor.u32 256, 104
    %1012 = vbcast.lane.b32.xlu0 %v958, %s1011
    %v1013 = vpop.permute.xlu0 %1012
    %s1015 = sor.u32 256, 112
    %1016 = vbcast.lane.b32.xlu0 %v958, %s1015
    %v1017 = vpop.permute.xlu0 %1016
    %s1019 = sor.u32 256, 120
    %1020 = vbcast.lane.b32.xlu0 %v958, %s1019
    %v1021 = vpop.permute.xlu0 %1020
    %v1022 = vlaneseq
    %v1023 = vshrl.u32 %v1022, 7
    %v1024 = vsub.s32 1, %v1023
    %v1025 = vrot.slane %v953, %v1024
    %1027 = vbcast.lane.b32.xlu0 %v1025, 256
    %v1028 = vpop.permute.xlu0 %1027
    %s1030 = sor.u32 256, 8
    %1031 = vbcast.lane.b32.xlu0 %v1025, %s1030
    %v1032 = vpop.permute.xlu0 %1031
    %s1034 = sor.u32 256, 16
    %1035 = vbcast.lane.b32.xlu0 %v1025, %s1034
    %v1036 = vpop.permute.xlu0 %1035
    %s1038 = sor.u32 256, 24
    %1039 = vbcast.lane.b32.xlu0 %v1025, %s1038
    %v1040 = vpop.permute.xlu0 %1039
    %s1042 = sor.u32 256, 32
    %1043 = vbcast.lane.b32.xlu0 %v1025, %s1042
    %v1044 = vpop.permute.xlu0 %1043
    %s1046 = sor.u32 256, 40
    %1047 = vbcast.lane.b32.xlu0 %v1025, %s1046
    %v1048 = vpop.permute.xlu0 %1047
    %s1050 = sor.u32 256, 48
    %1051 = vbcast.lane.b32.xlu0 %v1025, %s1050
    %v1052 = vpop.permute.xlu0 %1051
    %s1054 = sor.u32 256, 56
    %1055 = vbcast.lane.b32.xlu0 %v1025, %s1054
    %v1056 = vpop.permute.xlu0 %1055
    %s1058 = sor.u32 256, 64
    %1059 = vbcast.lane.b32.xlu0 %v1025, %s1058
    %v1060 = vpop.permute.xlu0 %1059
    %s1062 = sor.u32 256, 72
    %1063 = vbcast.lane.b32.xlu0 %v1025, %s1062
    %v1064 = vpop.permute.xlu0 %1063
    %s1066 = sor.u32 256, 80
    %1067 = vbcast.lane.b32.xlu0 %v1025, %s1066
    %v1068 = vpop.permute.xlu0 %1067
    %s1070 = sor.u32 256, 88
    %1071 = vbcast.lane.b32.xlu0 %v1025, %s1070
    %v1072 = vpop.permute.xlu0 %1071
    %s1074 = sor.u32 256, 96
    %1075 = vbcast.lane.b32.xlu0 %v1025, %s1074
    %v1076 = vpop.permute.xlu0 %1075
    %s1078 = sor.u32 256, 104
    %1079 = vbcast.lane.b32.xlu0 %v1025, %s1078
    %v1080 = vpop.permute.xlu0 %1079
    %s1082 = sor.u32 256, 112
    %1083 = vbcast.lane.b32.xlu0 %v1025, %s1082
    %v1084 = vpop.permute.xlu0 %1083
    %s1086 = sor.u32 256, 120
    %1087 = vbcast.lane.b32.xlu0 %v1025, %s1086
    %v1088 = vpop.permute.xlu0 %1087
    %v1121 = vadd.f32 %v858, %v961
    %v1122 = vadd.f32 %v861, %v965
    %v1123 = vadd.f32 %v864, %v969
    %v1124 = vadd.f32 %v867, %v973
    %v1125 = vadd.f32 %v870, %v977
    %v1126 = vadd.f32 %v873, %v981
    %v1127 = vadd.f32 %v876, %v985
    %v1128 = vadd.f32 %v879, %v989
    %v1129 = vadd.f32 %v882, %v993
    %v1130 = vadd.f32 %v885, %v997
    %v1131 = vadd.f32 %v888, %v1001
    %v1132 = vadd.f32 %v891, %v1005
    %v1133 = vadd.f32 %v894, %v1009
    %v1134 = vadd.f32 %v897, %v1013
    %v1135 = vadd.f32 %v900, %v1017
    %v1136 = vadd.f32 %v903, %v1021
    %v1137 = vadd.f32 %v906, %v1028
    %v1138 = vadd.f32 %v909, %v1032
    %v1139 = vadd.f32 %v912, %v1036
    %v1140 = vadd.f32 %v915, %v1040
    %v1141 = vadd.f32 %v918, %v1044
    %v1142 = vadd.f32 %v921, %v1048
    %v1143 = vadd.f32 %v924, %v1052
    %v1144 = vadd.f32 %v927, %v1056
    %v1145 = vadd.f32 %v930, %v1060
    %v1146 = vadd.f32 %v933, %v1064
    %v1147 = vadd.f32 %v936, %v1068
    %v1148 = vadd.f32 %v939, %v1072
    %v1149 = vadd.f32 %v942, %v1076
    %v1150 = vadd.f32 %v945, %v1080
    %v1151 = vadd.f32 %v948, %v1084
    %v1152 = vadd.f32 %v951, %v1088
    %1185 = vset.pattern.permute.xlu0 0
    %1186 = vperm.xlu0 %1185, %v1121
    %v1187 = vpop.permute.xlu0 %1186
    %1188 = vset.pattern.permute.xlu0 0
    %1189 = vperm.xlu0 %1188, %v1122
    %v1190 = vpop.permute.xlu0 %1189
    %1191 = vset.pattern.permute.xlu0 0
    %1192 = vperm.xlu0 %1191, %v1123
    %v1193 = vpop.permute.xlu0 %1192
    %1194 = vset.pattern.permute.xlu0 0
    %1195 = vperm.xlu0 %1194, %v1124
    %v1196 = vpop.permute.xlu0 %1195
    %1197 = vset.pattern.permute.xlu0 0
    %1198 = vperm.xlu0 %1197, %v1125
    %v1199 = vpop.permute.xlu0 %1198
    %1200 = vset.pattern.permute.xlu0 0
    %1201 = vperm.xlu0 %1200, %v1126
    %v1202 = vpop.permute.xlu0 %1201
    %1203 = vset.pattern.permute.xlu0 0
    %1204 = vperm.xlu0 %1203, %v1127
    %v1205 = vpop.permute.xlu0 %1204
    %1206 = vset.pattern.permute.xlu0 0
    %1207 = vperm.xlu0 %1206, %v1128
    %v1208 = vpop.permute.xlu0 %1207
    %1209 = vset.pattern.permute.xlu0 0
    %1210 = vperm.xlu0 %1209, %v1129
    %v1211 = vpop.permute.xlu0 %1210
    %1212 = vset.pattern.permute.xlu0 0
    %1213 = vperm.xlu0 %1212, %v1130
    %v1214 = vpop.permute.xlu0 %1213
    %1215 = vset.pattern.permute.xlu0 0
    %1216 = vperm.xlu0 %1215, %v1131
    %v1217 = vpop.permute.xlu0 %1216
    %1218 = vset.pattern.permute.xlu0 0
    %1219 = vperm.xlu0 %1218, %v1132
    %v1220 = vpop.permute.xlu0 %1219
    %1221 = vset.pattern.permute.xlu0 0
    %1222 = vperm.xlu0 %1221, %v1133
    %v1223 = vpop.permute.xlu0 %1222
    %1224 = vset.pattern.permute.xlu0 0
    %1225 = vperm.xlu0 %1224, %v1134
    %v1226 = vpop.permute.xlu0 %1225
    %1227 = vset.pattern.permute.xlu0 0
    %1228 = vperm.xlu0 %1227, %v1135
    %v1229 = vpop.permute.xlu0 %1228
    %1230 = vset.pattern.permute.xlu0 0
    %1231 = vperm.xlu0 %1230, %v1136
    %v1232 = vpop.permute.xlu0 %1231
    %1233 = vset.pattern.permute.xlu0 0
    %1234 = vperm.xlu0 %1233, %v1137
    %v1235 = vpop.permute.xlu0 %1234
    %1236 = vset.pattern.permute.xlu0 0
    %1237 = vperm.xlu0 %1236, %v1138
    %v1238 = vpop.permute.xlu0 %1237
    %1239 = vset.pattern.permute.xlu0 0
    %1240 = vperm.xlu0 %1239, %v1139
    %v1241 = vpop.permute.xlu0 %1240
    %1242 = vset.pattern.permute.xlu0 0
    %1243 = vperm.xlu0 %1242, %v1140
    %v1244 = vpop.permute.xlu0 %1243
    %1245 = vset.pattern.permute.xlu0 0
    %1246 = vperm.xlu0 %1245, %v1141
    %v1247 = vpop.permute.xlu0 %1246
    %1248 = vset.pattern.permute.xlu0 0
    %1249 = vperm.xlu0 %1248, %v1142
    %v1250 = vpop.permute.xlu0 %1249
    %1251 = vset.pattern.permute.xlu0 0
    %1252 = vperm.xlu0 %1251, %v1143
    %v1253 = vpop.permute.xlu0 %1252
    %1254 = vset.pattern.permute.xlu0 0
    %1255 = vperm.xlu0 %1254, %v1144
    %v1256 = vpop.permute.xlu0 %1255
    %1257 = vset.pattern.permute.xlu0 0
    %1258 = vperm.xlu0 %1257, %v1145
    %v1259 = vpop.permute.xlu0 %1258
    %1260 = vset.pattern.permute.xlu0 0
    %1261 = vperm.xlu0 %1260, %v1146
    %v1262 = vpop.permute.xlu0 %1261
    %1263 = vset.pattern.permute.xlu0 0
    %1264 = vperm.xlu0 %1263, %v1147
    %v1265 = vpop.permute.xlu0 %1264
    %1266 = vset.pattern.permute.xlu0 0
    %1267 = vperm.xlu0 %1266, %v1148
    %v1268 = vpop.permute.xlu0 %1267
    %1269 = vset.pattern.permute.xlu0 0
    %1270 = vperm.xlu0 %1269, %v1149
    %v1271 = vpop.permute.xlu0 %1270
    %1272 = vset.pattern.permute.xlu0 0
    %1273 = vperm.xlu0 %1272, %v1150
    %v1274 = vpop.permute.xlu0 %1273
    %1275 = vset.pattern.permute.xlu0 0
    %1276 = vperm.xlu0 %1275, %v1151
    %v1277 = vpop.permute.xlu0 %1276
    %1278 = vset.pattern.permute.xlu0 0
    %1279 = vperm.xlu0 %1278, %v1152
    %v1280 = vpop.permute.xlu0 %1279
    %v1281 = vlaneseq
    %v1282 = vand.u32 %v1281, 127
    %v1283 = vlaneseq
    %v1284 = vshrl.u32 %v1283, 7
    %v1285 = vsub.s32 %v1282, %v1284
    %v1286 = vrot.slane %v1187, %v1285
    %v1287 = vadd.s32 %v1282, 4294967288
    %v1288 = vlaneseq
    %v1289 = vshrl.u32 %v1288, 7
    %v1290 = vsub.s32 %v1287, %v1289
    %v1291 = vrot.slane %v1190, %v1290
    %vm1292 = vcmask 130112
    %v1293 = vsel %vm1292, %v1291, %v1286
    %v1294 = vadd.s32 %v1282, 4294967280
    %v1295 = vlaneseq
    %v1296 = vshrl.u32 %v1295, 7
    %v1297 = vsub.s32 %v1294, %v1296
    %v1298 = vrot.slane %v1193, %v1297
    %vm1299 = vcmask 195712
    %v1300 = vsel %vm1299, %v1298, %v1293
    %v1301 = vadd.s32 %v1282, 4294967272
    %v1302 = vlaneseq
    %v1303 = vshrl.u32 %v1302, 7
    %v1304 = vsub.s32 %v1301, %v1303
    %v1305 = vrot.slane %v1196, %v1304
    %vm1306 = vcmask 261312
    %v1307 = vsel %vm1306, %v1305, %v1300
    %v1308 = vadd.s32 %v1282, 4294967264
    %v1309 = vlaneseq
    %v1310 = vshrl.u32 %v1309, 7
    %v1311 = vsub.s32 %v1308, %v1310
    %v1312 = vrot.slane %v1199, %v1311
    %vm1313 = vcmask 326912
    %v1314 = vsel %vm1313, %v1312, %v1307
    %v1315 = vadd.s32 %v1282, 4294967256
    %v1316 = vlaneseq
    %v1317 = vshrl.u32 %v1316, 7
    %v1318 = vsub.s32 %v1315, %v1317
    %v1319 = vrot.slane %v1202, %v1318
    %vm1320 = vcmask 392512
    %v1321 = vsel %vm1320, %v1319, %v1314
    %v1322 = vadd.s32 %v1282, 4294967248
    %v1323 = vlaneseq
    %v1324 = vshrl.u32 %v1323, 7
    %v1325 = vsub.s32 %v1322, %v1324
    %v1326 = vrot.slane %v1205, %v1325
    %vm1327 = vcmask 458112
    %v1328 = vsel %vm1327, %v1326, %v1321
    %v1329 = vadd.s32 %v1282, 4294967240
    %v1330 = vlaneseq
    %v1331 = vshrl.u32 %v1330, 7
    %v1332 = vsub.s32 %v1329, %v1331
    %v1333 = vrot.slane %v1208, %v1332
    %vm1334 = vcmask 523712
    %v1335 = vsel %vm1334, %v1333, %v1328
    %v1336 = vadd.s32 %v1282, 4294967232
    %v1337 = vlaneseq
    %v1338 = vshrl.u32 %v1337, 7
    %v1339 = vsub.s32 %v1336, %v1338
    %v1340 = vrot.slane %v1211, %v1339
    %vm1341 = vcmask 589312
    %v1342 = vsel %vm1341, %v1340, %v1335
    %v1343 = vadd.s32 %v1282, 4294967224
    %v1344 = vlaneseq
    %v1345 = vshrl.u32 %v1344, 7
    %v1346 = vsub.s32 %v1343, %v1345
    %v1347 = vrot.slane %v1214, %v1346
    %vm1348 = vcmask 654912
    %v1349 = vsel %vm1348, %v1347, %v1342
    %v1350 = vadd.s32 %v1282, 4294967216
    %v1351 = vlaneseq
    %v1352 = vshrl.u32 %v1351, 7
    %v1353 = vsub.s32 %v1350, %v1352
    %v1354 = vrot.slane %v1217, %v1353
    %vm1355 = vcmask 720512
    %v1356 = vsel %vm1355, %v1354, %v1349
    %v1357 = vadd.s32 %v1282, 4294967208
    %v1358 = vlaneseq
    %v1359 = vshrl.u32 %v1358, 7
    %v1360 = vsub.s32 %v1357, %v1359
    %v1361 = vrot.slane %v1220, %v1360
    %vm1362 = vcmask 786112
    %v1363 = vsel %vm1362, %v1361, %v1356
    %v1364 = vadd.s32 %v1282, 4294967200
    %v1365 = vlaneseq
    %v1366 = vshrl.u32 %v1365, 7
    %v1367 = vsub.s32 %v1364, %v1366
    %v1368 = vrot.slane %v1223, %v1367
    %vm1369 = vcmask 851712
    %v1370 = vsel %vm1369, %v1368, %v1363
    %v1371 = vadd.s32 %v1282, 4294967192
    %v1372 = vlaneseq
    %v1373 = vshrl.u32 %v1372, 7
    %v1374 = vsub.s32 %v1371, %v1373
    %v1375 = vrot.slane %v1226, %v1374
    %vm1376 = vcmask 917312
    %v1377 = vsel %vm1376, %v1375, %v1370
    %v1378 = vadd.s32 %v1282, 4294967184
    %v1379 = vlaneseq
    %v1380 = vshrl.u32 %v1379, 7
    %v1381 = vsub.s32 %v1378, %v1380
    %v1382 = vrot.slane %v1229, %v1381
    %vm1383 = vcmask 982912
    %v1384 = vsel %vm1383, %v1382, %v1377
    %v1385 = vadd.s32 %v1282, 4294967176
    %v1386 = vlaneseq
    %v1387 = vshrl.u32 %v1386, 7
    %v1388 = vsub.s32 %v1385, %v1387
    %v1389 = vrot.slane %v1232, %v1388
    %vm1390 = vcmask 1048512
    %v1391 = vsel %vm1390, %v1389, %v1384
    %v1392 = vlaneseq
    %v1393 = vshrl.u32 %v1392, 7
    %v1394 = vsub.s32 %v1282, %v1393
    %v1395 = vrot.slane %v1235, %v1394
    %v1396 = vlaneseq
    %v1397 = vshrl.u32 %v1396, 7
    %v1398 = vsub.s32 %v1287, %v1397
    %v1399 = vrot.slane %v1238, %v1398
    %v1400 = vsel %vm1292, %v1399, %v1395
    %v1401 = vlaneseq
    %v1402 = vshrl.u32 %v1401, 7
    %v1403 = vsub.s32 %v1294, %v1402
    %v1404 = vrot.slane %v1241, %v1403
    %v1405 = vsel %vm1299, %v1404, %v1400
    %v1406 = vlaneseq
    %v1407 = vshrl.u32 %v1406, 7
    %v1408 = vsub.s32 %v1301, %v1407
    %v1409 = vrot.slane %v1244, %v1408
    %v1410 = vsel %vm1306, %v1409, %v1405
    %v1411 = vlaneseq
    %v1412 = vshrl.u32 %v1411, 7
    %v1413 = vsub.s32 %v1308, %v1412
    %v1414 = vrot.slane %v1247, %v1413
    %v1415 = vsel %vm1313, %v1414, %v1410
    %v1416 = vlaneseq
    %v1417 = vshrl.u32 %v1416, 7
    %v1418 = vsub.s32 %v1315, %v1417
    %v1419 = vrot.slane %v1250, %v1418
    %v1420 = vsel %vm1320, %v1419, %v1415
    %v1421 = vlaneseq
    %v1422 = vshrl.u32 %v1421, 7
    %v1423 = vsub.s32 %v1322, %v1422
    %v1424 = vrot.slane %v1253, %v1423
    %v1425 = vsel %vm1327, %v1424, %v1420
    %v1426 = vlaneseq
    %v1427 = vshrl.u32 %v1426, 7
    %v1428 = vsub.s32 %v1329, %v1427
    %v1429 = vrot.slane %v1256, %v1428
    %v1430 = vsel %vm1334, %v1429, %v1425
    %v1431 = vlaneseq
    %v1432 = vshrl.u32 %v1431, 7
    %v1433 = vsub.s32 %v1336, %v1432
    %v1434 = vrot.slane %v1259, %v1433
    %v1435 = vsel %vm1341, %v1434, %v1430
    %v1436 = vlaneseq
    %v1437 = vshrl.u32 %v1436, 7
    %v1438 = vsub.s32 %v1343, %v1437
    %v1439 = vrot.slane %v1262, %v1438
    %v1440 = vsel %vm1348, %v1439, %v1435
    %v1441 = vlaneseq
    %v1442 = vshrl.u32 %v1441, 7
    %v1443 = vsub.s32 %v1350, %v1442
    %v1444 = vrot.slane %v1265, %v1443
    %v1445 = vsel %vm1355, %v1444, %v1440
    %v1446 = vlaneseq
    %v1447 = vshrl.u32 %v1446, 7
    %v1448 = vsub.s32 %v1357, %v1447
    %v1449 = vrot.slane %v1268, %v1448
    %v1450 = vsel %vm1362, %v1449, %v1445
    %v1451 = vlaneseq
    %v1452 = vshrl.u32 %v1451, 7
    %v1453 = vsub.s32 %v1364, %v1452
    %v1454 = vrot.slane %v1271, %v1453
    %v1455 = vsel %vm1369, %v1454, %v1450
    %v1456 = vlaneseq
    %v1457 = vshrl.u32 %v1456, 7
    %v1458 = vsub.s32 %v1371, %v1457
    %v1459 = vrot.slane %v1274, %v1458
    %v1460 = vsel %vm1376, %v1459, %v1455
    %v1461 = vlaneseq
    %v1462 = vshrl.u32 %v1461, 7
    %v1463 = vsub.s32 %v1378, %v1462
    %v1464 = vrot.slane %v1277, %v1463
    %v1465 = vsel %vm1383, %v1464, %v1460
    %v1466 = vlaneseq
    %v1467 = vshrl.u32 %v1466, 7
    %v1468 = vsub.s32 %v1385, %v1467
    %v1469 = vrot.slane %v1280, %v1468
    %v1470 = vsel %vm1390, %v1469, %v1465
    %vm1471 = vcmask 1041409
    %v1472 = vsel %vm1471, %v1470, %v1391
    %vm1474 = vcmask 1041408
    %v1475 = vsel %vm1474, %v1472, -inf
    %1476 = vmax.xlane.f32.xlu0 %v1475
    %v1477 = vpop.xlane.xlu0 %1476
    %v1479 = vlaneseq
    %v1480 = vshrl.u32 %v1479, 7
    %v1481 = vsub.s32 0, %v1480
    %v1482 = vrot.slane %v1477, %v1481
    %v1483 = vlaneseq
    %v1484 = vshrl.u32 %v1483, 7
    %v1485 = vsub.s32 1, %v1484
    %v1486 = vrot.slane %v1477, %v1485
    %v1489 = vsub.f32 %v1121, %v1482
    %v1490 = vsub.f32 %v1122, %v1482
    %v1491 = vsub.f32 %v1123, %v1482
    %v1492 = vsub.f32 %v1124, %v1482
    %v1493 = vsub.f32 %v1125, %v1482
    %v1494 = vsub.f32 %v1126, %v1482
    %v1495 = vsub.f32 %v1127, %v1482
    %v1496 = vsub.f32 %v1128, %v1482
    %v1497 = vsub.f32 %v1129, %v1482
    %v1498 = vsub.f32 %v1130, %v1482
    %v1499 = vsub.f32 %v1131, %v1482
    %v1500 = vsub.f32 %v1132, %v1482
    %v1501 = vsub.f32 %v1133, %v1482
    %v1502 = vsub.f32 %v1134, %v1482
    %v1503 = vsub.f32 %v1135, %v1482
    %v1504 = vsub.f32 %v1136, %v1482
    %v1505 = vsub.f32 %v1137, %v1486
    %v1506 = vsub.f32 %v1138, %v1486
    %v1507 = vsub.f32 %v1139, %v1486
    %v1508 = vsub.f32 %v1140, %v1486
    %v1509 = vsub.f32 %v1141, %v1486
    %v1510 = vsub.f32 %v1142, %v1486
    %v1511 = vsub.f32 %v1143, %v1486
    %v1512 = vsub.f32 %v1144, %v1486
    %v1513 = vsub.f32 %v1145, %v1486
    %v1514 = vsub.f32 %v1146, %v1486
    %v1515 = vsub.f32 %v1147, %v1486
    %v1516 = vsub.f32 %v1148, %v1486
    %v1517 = vsub.f32 %v1149, %v1486
    %v1518 = vsub.f32 %v1150, %v1486
    %v1519 = vsub.f32 %v1151, %v1486
    %v1520 = vsub.f32 %v1152, %v1486
    %v1521 = vmul.f32 %v1489, 1.442695
    %v1522 = vpow.pop %v1521
    %v1523 = vmul.f32 %v1490, 1.442695
    %v1524 = vpow.pop %v1523
    %v1525 = vmul.f32 %v1491, 1.442695
    %v1526 = vpow.pop %v1525
    %v1527 = vmul.f32 %v1492, 1.442695
    %v1528 = vpow.pop %v1527
    %v1529 = vmul.f32 %v1493, 1.442695
    %v1530 = vpow.pop %v1529
    %v1531 = vmul.f32 %v1494, 1.442695
    %v1532 = vpow.pop %v1531
    %v1533 = vmul.f32 %v1495, 1.442695
    %v1534 = vpow.pop %v1533
    %v1535 = vmul.f32 %v1496, 1.442695
    %v1536 = vpow.pop %v1535
    %v1537 = vmul.f32 %v1497, 1.442695
    %v1538 = vpow.pop %v1537
    %v1539 = vmul.f32 %v1498, 1.442695
    %v1540 = vpow.pop %v1539
    %v1541 = vmul.f32 %v1499, 1.442695
    %v1542 = vpow.pop %v1541
    %v1543 = vmul.f32 %v1500, 1.442695
    %v1544 = vpow.pop %v1543
    %v1545 = vmul.f32 %v1501, 1.442695
    %v1546 = vpow.pop %v1545
    %v1547 = vmul.f32 %v1502, 1.442695
    %v1548 = vpow.pop %v1547
    %v1549 = vmul.f32 %v1503, 1.442695
    %v1550 = vpow.pop %v1549
    %v1551 = vmul.f32 %v1504, 1.442695
    %v1552 = vpow.pop %v1551
    %v1553 = vmul.f32 %v1505, 1.442695
    %v1554 = vpow.pop %v1553
    %v1555 = vmul.f32 %v1506, 1.442695
    %v1556 = vpow.pop %v1555
    %v1557 = vmul.f32 %v1507, 1.442695
    %v1558 = vpow.pop %v1557
    %v1559 = vmul.f32 %v1508, 1.442695
    %v1560 = vpow.pop %v1559
    %v1561 = vmul.f32 %v1509, 1.442695
    %v1562 = vpow.pop %v1561
    %v1563 = vmul.f32 %v1510, 1.442695
    %v1564 = vpow.pop %v1563
    %v1565 = vmul.f32 %v1511, 1.442695
    %v1566 = vpow.pop %v1565
    %v1567 = vmul.f32 %v1512, 1.442695
    %v1568 = vpow.pop %v1567
    %v1569 = vmul.f32 %v1513, 1.442695
    %v1570 = vpow.pop %v1569
    %v1571 = vmul.f32 %v1514, 1.442695
    %v1572 = vpow.pop %v1571
    %v1573 = vmul.f32 %v1515, 1.442695
    %v1574 = vpow.pop %v1573
    %v1575 = vmul.f32 %v1516, 1.442695
    %v1576 = vpow.pop %v1575
    %v1577 = vmul.f32 %v1517, 1.442695
    %v1578 = vpow.pop %v1577
    %v1579 = vmul.f32 %v1518, 1.442695
    %v1580 = vpow.pop %v1579
    %v1581 = vmul.f32 %v1519, 1.442695
    %v1582 = vpow.pop %v1581
    %v1583 = vmul.f32 %v1520, 1.442695
    %v1584 = vpow.pop %v1583
    %1617 = vset.pattern.permute.xlu0 0
    %1618 = vperm.xlu0 %1617, %v1522
    %v1619 = vpop.permute.xlu0 %1618
    %1620 = vset.pattern.permute.xlu0 0
    %1621 = vperm.xlu0 %1620, %v1524
    %v1622 = vpop.permute.xlu0 %1621
    %1623 = vset.pattern.permute.xlu0 0
    %1624 = vperm.xlu0 %1623, %v1526
    %v1625 = vpop.permute.xlu0 %1624
    %1626 = vset.pattern.permute.xlu0 0
    %1627 = vperm.xlu0 %1626, %v1528
    %v1628 = vpop.permute.xlu0 %1627
    %1629 = vset.pattern.permute.xlu0 0
    %1630 = vperm.xlu0 %1629, %v1530
    %v1631 = vpop.permute.xlu0 %1630
    %1632 = vset.pattern.permute.xlu0 0
    %1633 = vperm.xlu0 %1632, %v1532
    %v1634 = vpop.permute.xlu0 %1633
    %1635 = vset.pattern.permute.xlu0 0
    %1636 = vperm.xlu0 %1635, %v1534
    %v1637 = vpop.permute.xlu0 %1636
    %1638 = vset.pattern.permute.xlu0 0
    %1639 = vperm.xlu0 %1638, %v1536
    %v1640 = vpop.permute.xlu0 %1639
    %1641 = vset.pattern.permute.xlu0 0
    %1642 = vperm.xlu0 %1641, %v1538
    %v1643 = vpop.permute.xlu0 %1642
    %1644 = vset.pattern.permute.xlu0 0
    %1645 = vperm.xlu0 %1644, %v1540
    %v1646 = vpop.permute.xlu0 %1645
    %1647 = vset.pattern.permute.xlu0 0
    %1648 = vperm.xlu0 %1647, %v1542
    %v1649 = vpop.permute.xlu0 %1648
    %1650 = vset.pattern.permute.xlu0 0
    %1651 = vperm.xlu0 %1650, %v1544
    %v1652 = vpop.permute.xlu0 %1651
    %1653 = vset.pattern.permute.xlu0 0
    %1654 = vperm.xlu0 %1653, %v1546
    %v1655 = vpop.permute.xlu0 %1654
    %1656 = vset.pattern.permute.xlu0 0
    %1657 = vperm.xlu0 %1656, %v1548
    %v1658 = vpop.permute.xlu0 %1657
    %1659 = vset.pattern.permute.xlu0 0
    %1660 = vperm.xlu0 %1659, %v1550
    %v1661 = vpop.permute.xlu0 %1660
    %1662 = vset.pattern.permute.xlu0 0
    %1663 = vperm.xlu0 %1662, %v1552
    %v1664 = vpop.permute.xlu0 %1663
    %1665 = vset.pattern.permute.xlu0 0
    %1666 = vperm.xlu0 %1665, %v1554
    %v1667 = vpop.permute.xlu0 %1666
    %1668 = vset.pattern.permute.xlu0 0
    %1669 = vperm.xlu0 %1668, %v1556
    %v1670 = vpop.permute.xlu0 %1669
    %1671 = vset.pattern.permute.xlu0 0
    %1672 = vperm.xlu0 %1671, %v1558
    %v1673 = vpop.permute.xlu0 %1672
    %1674 = vset.pattern.permute.xlu0 0
    %1675 = vperm.xlu0 %1674, %v1560
    %v1676 = vpop.permute.xlu0 %1675
    %1677 = vset.pattern.permute.xlu0 0
    %1678 = vperm.xlu0 %1677, %v1562
    %v1679 = vpop.permute.xlu0 %1678
    %1680 = vset.pattern.permute.xlu0 0
    %1681 = vperm.xlu0 %1680, %v1564
    %v1682 = vpop.permute.xlu0 %1681
    %1683 = vset.pattern.permute.xlu0 0
    %1684 = vperm.xlu0 %1683, %v1566
    %v1685 = vpop.permute.xlu0 %1684
    %1686 = vset.pattern.permute.xlu0 0
    %1687 = vperm.xlu0 %1686, %v1568
    %v1688 = vpop.permute.xlu0 %1687
    %1689 = vset.pattern.permute.xlu0 0
    %1690 = vperm.xlu0 %1689, %v1570
    %v1691 = vpop.permute.xlu0 %1690
    %1692 = vset.pattern.permute.xlu0 0
    %1693 = vperm.xlu0 %1692, %v1572
    %v1694 = vpop.permute.xlu0 %1693
    %1695 = vset.pattern.permute.xlu0 0
    %1696 = vperm.xlu0 %1695, %v1574
    %v1697 = vpop.permute.xlu0 %1696
    %1698 = vset.pattern.permute.xlu0 0
    %1699 = vperm.xlu0 %1698, %v1576
    %v1700 = vpop.permute.xlu0 %1699
    %1701 = vset.pattern.permute.xlu0 0
    %1702 = vperm.xlu0 %1701, %v1578
    %v1703 = vpop.permute.xlu0 %1702
    %1704 = vset.pattern.permute.xlu0 0
    %1705 = vperm.xlu0 %1704, %v1580
    %v1706 = vpop.permute.xlu0 %1705
    %1707 = vset.pattern.permute.xlu0 0
    %1708 = vperm.xlu0 %1707, %v1582
    %v1709 = vpop.permute.xlu0 %1708
    %1710 = vset.pattern.permute.xlu0 0
    %1711 = vperm.xlu0 %1710, %v1584
    %v1712 = vpop.permute.xlu0 %1711
    %v1713 = vlaneseq
    %v1714 = vshrl.u32 %v1713, 7
    %v1715 = vsub.s32 %v1282, %v1714
    %v1716 = vrot.slane %v1619, %v1715
    %v1717 = vlaneseq
    %v1718 = vshrl.u32 %v1717, 7
    %v1719 = vsub.s32 %v1287, %v1718
    %v1720 = vrot.slane %v1622, %v1719
    %v1721 = vsel %vm1292, %v1720, %v1716
    %v1722 = vlaneseq
    %v1723 = vshrl.u32 %v1722, 7
    %v1724 = vsub.s32 %v1294, %v1723
    %v1725 = vrot.slane %v1625, %v1724
    %v1726 = vsel %vm1299, %v1725, %v1721
    %v1727 = vlaneseq
    %v1728 = vshrl.u32 %v1727, 7
    %v1729 = vsub.s32 %v1301, %v1728
    %v1730 = vrot.slane %v1628, %v1729
    %v1731 = vsel %vm1306, %v1730, %v1726
    %v1732 = vlaneseq
    %v1733 = vshrl.u32 %v1732, 7
    %v1734 = vsub.s32 %v1308, %v1733
    %v1735 = vrot.slane %v1631, %v1734
    %v1736 = vsel %vm1313, %v1735, %v1731
    %v1737 = vlaneseq
    %v1738 = vshrl.u32 %v1737, 7
    %v1739 = vsub.s32 %v1315, %v1738
    %v1740 = vrot.slane %v1634, %v1739
    %v1741 = vsel %vm1320, %v1740, %v1736
    %v1742 = vlaneseq
    %v1743 = vshrl.u32 %v1742, 7
    %v1744 = vsub.s32 %v1322, %v1743
    %v1745 = vrot.slane %v1637, %v1744
    %v1746 = vsel %vm1327, %v1745, %v1741
    %v1747 = vlaneseq
    %v1748 = vshrl.u32 %v1747, 7
    %v1749 = vsub.s32 %v1329, %v1748
    %v1750 = vrot.slane %v1640, %v1749
    %v1751 = vsel %vm1334, %v1750, %v1746
    %v1752 = vlaneseq
    %v1753 = vshrl.u32 %v1752, 7
    %v1754 = vsub.s32 %v1336, %v1753
    %v1755 = vrot.slane %v1643, %v1754
    %v1756 = vsel %vm1341, %v1755, %v1751
    %v1757 = vlaneseq
    %v1758 = vshrl.u32 %v1757, 7
    %v1759 = vsub.s32 %v1343, %v1758
    %v1760 = vrot.slane %v1646, %v1759
    %v1761 = vsel %vm1348, %v1760, %v1756
    %v1762 = vlaneseq
    %v1763 = vshrl.u32 %v1762, 7
    %v1764 = vsub.s32 %v1350, %v1763
    %v1765 = vrot.slane %v1649, %v1764
    %v1766 = vsel %vm1355, %v1765, %v1761
    %v1767 = vlaneseq
    %v1768 = vshrl.u32 %v1767, 7
    %v1769 = vsub.s32 %v1357, %v1768
    %v1770 = vrot.slane %v1652, %v1769
    %v1771 = vsel %vm1362, %v1770, %v1766
    %v1772 = vlaneseq
    %v1773 = vshrl.u32 %v1772, 7
    %v1774 = vsub.s32 %v1364, %v1773
    %v1775 = vrot.slane %v1655, %v1774
    %v1776 = vsel %vm1369, %v1775, %v1771
    %v1777 = vlaneseq
    %v1778 = vshrl.u32 %v1777, 7
    %v1779 = vsub.s32 %v1371, %v1778
    %v1780 = vrot.slane %v1658, %v1779
    %v1781 = vsel %vm1376, %v1780, %v1776
    %v1782 = vlaneseq
    %v1783 = vshrl.u32 %v1782, 7
    %v1784 = vsub.s32 %v1378, %v1783
    %v1785 = vrot.slane %v1661, %v1784
    %v1786 = vsel %vm1383, %v1785, %v1781
    %v1787 = vlaneseq
    %v1788 = vshrl.u32 %v1787, 7
    %v1789 = vsub.s32 %v1385, %v1788
    %v1790 = vrot.slane %v1664, %v1789
    %v1791 = vsel %vm1390, %v1790, %v1786
    %v1792 = vlaneseq
    %v1793 = vshrl.u32 %v1792, 7
    %v1794 = vsub.s32 %v1282, %v1793
    %v1795 = vrot.slane %v1667, %v1794
    %v1796 = vlaneseq
    %v1797 = vshrl.u32 %v1796, 7
    %v1798 = vsub.s32 %v1287, %v1797
    %v1799 = vrot.slane %v1670, %v1798
    %v1800 = vsel %vm1292, %v1799, %v1795
    %v1801 = vlaneseq
    %v1802 = vshrl.u32 %v1801, 7
    %v1803 = vsub.s32 %v1294, %v1802
    %v1804 = vrot.slane %v1673, %v1803
    %v1805 = vsel %vm1299, %v1804, %v1800
    %v1806 = vlaneseq
    %v1807 = vshrl.u32 %v1806, 7
    %v1808 = vsub.s32 %v1301, %v1807
    %v1809 = vrot.slane %v1676, %v1808
    %v1810 = vsel %vm1306, %v1809, %v1805
    %v1811 = vlaneseq
    %v1812 = vshrl.u32 %v1811, 7
    %v1813 = vsub.s32 %v1308, %v1812
    %v1814 = vrot.slane %v1679, %v1813
    %v1815 = vsel %vm1313, %v1814, %v1810
    %v1816 = vlaneseq
    %v1817 = vshrl.u32 %v1816, 7
    %v1818 = vsub.s32 %v1315, %v1817
    %v1819 = vrot.slane %v1682, %v1818
    %v1820 = vsel %vm1320, %v1819, %v1815
    %v1821 = vlaneseq
    %v1822 = vshrl.u32 %v1821, 7
    %v1823 = vsub.s32 %v1322, %v1822
    %v1824 = vrot.slane %v1685, %v1823
    %v1825 = vsel %vm1327, %v1824, %v1820
    %v1826 = vlaneseq
    %v1827 = vshrl.u32 %v1826, 7
    %v1828 = vsub.s32 %v1329, %v1827
    %v1829 = vrot.slane %v1688, %v1828
    %v1830 = vsel %vm1334, %v1829, %v1825
    %v1831 = vlaneseq
    %v1832 = vshrl.u32 %v1831, 7
    %v1833 = vsub.s32 %v1336, %v1832
    %v1834 = vrot.slane %v1691, %v1833
    %v1835 = vsel %vm1341, %v1834, %v1830
    %v1836 = vlaneseq
    %v1837 = vshrl.u32 %v1836, 7
    %v1838 = vsub.s32 %v1343, %v1837
    %v1839 = vrot.slane %v1694, %v1838
    %v1840 = vsel %vm1348, %v1839, %v1835
    %v1841 = vlaneseq
    %v1842 = vshrl.u32 %v1841, 7
    %v1843 = vsub.s32 %v1350, %v1842
    %v1844 = vrot.slane %v1697, %v1843
    %v1845 = vsel %vm1355, %v1844, %v1840
    %v1846 = vlaneseq
    %v1847 = vshrl.u32 %v1846, 7
    %v1848 = vsub.s32 %v1357, %v1847
    %v1849 = vrot.slane %v1700, %v1848
    %v1850 = vsel %vm1362, %v1849, %v1845
    %v1851 = vlaneseq
    %v1852 = vshrl.u32 %v1851, 7
    %v1853 = vsub.s32 %v1364, %v1852
    %v1854 = vrot.slane %v1703, %v1853
    %v1855 = vsel %vm1369, %v1854, %v1850
    %v1856 = vlaneseq
    %v1857 = vshrl.u32 %v1856, 7
    %v1858 = vsub.s32 %v1371, %v1857
    %v1859 = vrot.slane %v1706, %v1858
    %v1860 = vsel %vm1376, %v1859, %v1855
    %v1861 = vlaneseq
    %v1862 = vshrl.u32 %v1861, 7
    %v1863 = vsub.s32 %v1378, %v1862
    %v1864 = vrot.slane %v1709, %v1863
    %v1865 = vsel %vm1383, %v1864, %v1860
    %v1866 = vlaneseq
    %v1867 = vshrl.u32 %v1866, 7
    %v1868 = vsub.s32 %v1385, %v1867
    %v1869 = vrot.slane %v1712, %v1868
    %v1870 = vsel %vm1390, %v1869, %v1865
    %v1871 = vsel %vm1471, %v1870, %v1791
    %v1873 = vsel %vm1474, %v1871, 0.0
    %1874 = vadd.xlane.f32.xlu0 %v1873
    %v1875 = vpop.xlane.xlu0 %1874
    %v1876 = vrcp.pop %v1875
    %v1878 = vlaneseq
    %v1879 = vshrl.u32 %v1878, 7
    %v1880 = vsub.s32 0, %v1879
    %v1881 = vrot.slane %v1876, %v1880
    %v1882 = vlaneseq
    %v1883 = vshrl.u32 %v1882, 7
    %v1884 = vsub.s32 1, %v1883
    %v1885 = vrot.slane %v1876, %v1884
    %v1888 = vmul.f32 %v1522, %v1881
    %v1889 = vmul.f32 %v1524, %v1881
    %v1890 = vmul.f32 %v1526, %v1881
    %v1891 = vmul.f32 %v1528, %v1881
    %v1892 = vmul.f32 %v1530, %v1881
    %v1893 = vmul.f32 %v1532, %v1881
    %v1894 = vmul.f32 %v1534, %v1881
    %v1895 = vmul.f32 %v1536, %v1881
    %v1896 = vmul.f32 %v1538, %v1881
    %v1897 = vmul.f32 %v1540, %v1881
    %v1898 = vmul.f32 %v1542, %v1881
    %v1899 = vmul.f32 %v1544, %v1881
    %v1900 = vmul.f32 %v1546, %v1881
    %v1901 = vmul.f32 %v1548, %v1881
    %v1902 = vmul.f32 %v1550, %v1881
    %v1903 = vmul.f32 %v1552, %v1881
    %v1904 = vmul.f32 %v1554, %v1885
    %v1905 = vmul.f32 %v1556, %v1885
    %v1906 = vmul.f32 %v1558, %v1885
    %v1907 = vmul.f32 %v1560, %v1885
    %v1908 = vmul.f32 %v1562, %v1885
    %v1909 = vmul.f32 %v1564, %v1885
    %v1910 = vmul.f32 %v1566, %v1885
    %v1911 = vmul.f32 %v1568, %v1885
    %v1912 = vmul.f32 %v1570, %v1885
    %v1913 = vmul.f32 %v1572, %v1885
    %v1914 = vmul.f32 %v1574, %v1885
    %v1915 = vmul.f32 %v1576, %v1885
    %v1916 = vmul.f32 %v1578, %v1885
    %v1917 = vmul.f32 %v1580, %v1885
    %v1918 = vmul.f32 %v1582, %v1885
    %v1919 = vmul.f32 %v1584, %v1885
    %1952 = vset.pattern.permute.xlu0 0
    %1953 = vperm.xlu0 %1952, %v1888
    %v1954 = vpop.permute.xlu0 %1953
    %1955 = vset.pattern.permute.xlu0 0
    %1956 = vperm.xlu0 %1955, %v1889
    %v1957 = vpop.permute.xlu0 %1956
    %1958 = vset.pattern.permute.xlu0 0
    %1959 = vperm.xlu0 %1958, %v1890
    %v1960 = vpop.permute.xlu0 %1959
    %1961 = vset.pattern.permute.xlu0 0
    %1962 = vperm.xlu0 %1961, %v1891
    %v1963 = vpop.permute.xlu0 %1962
    %1964 = vset.pattern.permute.xlu0 0
    %1965 = vperm.xlu0 %1964, %v1892
    %v1966 = vpop.permute.xlu0 %1965
    %1967 = vset.pattern.permute.xlu0 0
    %1968 = vperm.xlu0 %1967, %v1893
    %v1969 = vpop.permute.xlu0 %1968
    %1970 = vset.pattern.permute.xlu0 0
    %1971 = vperm.xlu0 %1970, %v1894
    %v1972 = vpop.permute.xlu0 %1971
    %1973 = vset.pattern.permute.xlu0 0
    %1974 = vperm.xlu0 %1973, %v1895
    %v1975 = vpop.permute.xlu0 %1974
    %1976 = vset.pattern.permute.xlu0 0
    %1977 = vperm.xlu0 %1976, %v1896
    %v1978 = vpop.permute.xlu0 %1977
    %1979 = vset.pattern.permute.xlu0 0
    %1980 = vperm.xlu0 %1979, %v1897
    %v1981 = vpop.permute.xlu0 %1980
    %1982 = vset.pattern.permute.xlu0 0
    %1983 = vperm.xlu0 %1982, %v1898
    %v1984 = vpop.permute.xlu0 %1983
    %1985 = vset.pattern.permute.xlu0 0
    %1986 = vperm.xlu0 %1985, %v1899
    %v1987 = vpop.permute.xlu0 %1986
    %1988 = vset.pattern.permute.xlu0 0
    %1989 = vperm.xlu0 %1988, %v1900
    %v1990 = vpop.permute.xlu0 %1989
    %1991 = vset.pattern.permute.xlu0 0
    %1992 = vperm.xlu0 %1991, %v1901
    %v1993 = vpop.permute.xlu0 %1992
    %1994 = vset.pattern.permute.xlu0 0
    %1995 = vperm.xlu0 %1994, %v1902
    %v1996 = vpop.permute.xlu0 %1995
    %1997 = vset.pattern.permute.xlu0 0
    %1998 = vperm.xlu0 %1997, %v1903
    %v1999 = vpop.permute.xlu0 %1998
    %2000 = vset.pattern.permute.xlu0 0
    %2001 = vperm.xlu0 %2000, %v1904
    %v2002 = vpop.permute.xlu0 %2001
    %2003 = vset.pattern.permute.xlu0 0
    %2004 = vperm.xlu0 %2003, %v1905
    %v2005 = vpop.permute.xlu0 %2004
    %2006 = vset.pattern.permute.xlu0 0
    %2007 = vperm.xlu0 %2006, %v1906
    %v2008 = vpop.permute.xlu0 %2007
    %2009 = vset.pattern.permute.xlu0 0
    %2010 = vperm.xlu0 %2009, %v1907
    %v2011 = vpop.permute.xlu0 %2010
    %2012 = vset.pattern.permute.xlu0 0
    %2013 = vperm.xlu0 %2012, %v1908
    %v2014 = vpop.permute.xlu0 %2013
    %2015 = vset.pattern.permute.xlu0 0
    %2016 = vperm.xlu0 %2015, %v1909
    %v2017 = vpop.permute.xlu0 %2016
    %2018 = vset.pattern.permute.xlu0 0
    %2019 = vperm.xlu0 %2018, %v1910
    %v2020 = vpop.permute.xlu0 %2019
    %2021 = vset.pattern.permute.xlu0 0
    %2022 = vperm.xlu0 %2021, %v1911
    %v2023 = vpop.permute.xlu0 %2022
    %2024 = vset.pattern.permute.xlu0 0
    %2025 = vperm.xlu0 %2024, %v1912
    %v2026 = vpop.permute.xlu0 %2025
    %2027 = vset.pattern.permute.xlu0 0
    %2028 = vperm.xlu0 %2027, %v1913
    %v2029 = vpop.permute.xlu0 %2028
    %2030 = vset.pattern.permute.xlu0 0
    %2031 = vperm.xlu0 %2030, %v1914
    %v2032 = vpop.permute.xlu0 %2031
    %2033 = vset.pattern.permute.xlu0 0
    %2034 = vperm.xlu0 %2033, %v1915
    %v2035 = vpop.permute.xlu0 %2034
    %2036 = vset.pattern.permute.xlu0 0
    %2037 = vperm.xlu0 %2036, %v1916
    %v2038 = vpop.permute.xlu0 %2037
    %2039 = vset.pattern.permute.xlu0 0
    %2040 = vperm.xlu0 %2039, %v1917
    %v2041 = vpop.permute.xlu0 %2040
    %2042 = vset.pattern.permute.xlu0 0
    %2043 = vperm.xlu0 %2042, %v1918
    %v2044 = vpop.permute.xlu0 %2043
    %2045 = vset.pattern.permute.xlu0 0
    %2046 = vperm.xlu0 %2045, %v1919
    %v2047 = vpop.permute.xlu0 %2046
    %v2048 = vlaneseq
    %v2049 = vshrl.u32 %v2048, 7
    %v2050 = vsub.s32 %v1282, %v2049
    %v2051 = vrot.slane %v1954, %v2050
    %v2052 = vlaneseq
    %v2053 = vshrl.u32 %v2052, 7
    %v2054 = vsub.s32 %v1287, %v2053
    %v2055 = vrot.slane %v1957, %v2054
    %v2056 = vsel %vm1292, %v2055, %v2051
    %v2057 = vlaneseq
    %v2058 = vshrl.u32 %v2057, 7
    %v2059 = vsub.s32 %v1294, %v2058
    %v2060 = vrot.slane %v1960, %v2059
    %v2061 = vsel %vm1299, %v2060, %v2056
    %v2062 = vlaneseq
    %v2063 = vshrl.u32 %v2062, 7
    %v2064 = vsub.s32 %v1301, %v2063
    %v2065 = vrot.slane %v1963, %v2064
    %v2066 = vsel %vm1306, %v2065, %v2061
    %v2067 = vlaneseq
    %v2068 = vshrl.u32 %v2067, 7
    %v2069 = vsub.s32 %v1308, %v2068
    %v2070 = vrot.slane %v1966, %v2069
    %v2071 = vsel %vm1313, %v2070, %v2066
    %v2072 = vlaneseq
    %v2073 = vshrl.u32 %v2072, 7
    %v2074 = vsub.s32 %v1315, %v2073
    %v2075 = vrot.slane %v1969, %v2074
    %v2076 = vsel %vm1320, %v2075, %v2071
    %v2077 = vlaneseq
    %v2078 = vshrl.u32 %v2077, 7
    %v2079 = vsub.s32 %v1322, %v2078
    %v2080 = vrot.slane %v1972, %v2079
    %v2081 = vsel %vm1327, %v2080, %v2076
    %v2082 = vlaneseq
    %v2083 = vshrl.u32 %v2082, 7
    %v2084 = vsub.s32 %v1329, %v2083
    %v2085 = vrot.slane %v1975, %v2084
    %v2086 = vsel %vm1334, %v2085, %v2081
    %v2087 = vlaneseq
    %v2088 = vshrl.u32 %v2087, 7
    %v2089 = vsub.s32 %v1336, %v2088
    %v2090 = vrot.slane %v1978, %v2089
    %v2091 = vsel %vm1341, %v2090, %v2086
    %v2092 = vlaneseq
    %v2093 = vshrl.u32 %v2092, 7
    %v2094 = vsub.s32 %v1343, %v2093
    %v2095 = vrot.slane %v1981, %v2094
    %v2096 = vsel %vm1348, %v2095, %v2091
    %v2097 = vlaneseq
    %v2098 = vshrl.u32 %v2097, 7
    %v2099 = vsub.s32 %v1350, %v2098
    %v2100 = vrot.slane %v1984, %v2099
    %v2101 = vsel %vm1355, %v2100, %v2096
    %v2102 = vlaneseq
    %v2103 = vshrl.u32 %v2102, 7
    %v2104 = vsub.s32 %v1357, %v2103
    %v2105 = vrot.slane %v1987, %v2104
    %v2106 = vsel %vm1362, %v2105, %v2101
    %v2107 = vlaneseq
    %v2108 = vshrl.u32 %v2107, 7
    %v2109 = vsub.s32 %v1364, %v2108
    %v2110 = vrot.slane %v1990, %v2109
    %v2111 = vsel %vm1369, %v2110, %v2106
    %v2112 = vlaneseq
    %v2113 = vshrl.u32 %v2112, 7
    %v2114 = vsub.s32 %v1371, %v2113
    %v2115 = vrot.slane %v1993, %v2114
    %v2116 = vsel %vm1376, %v2115, %v2111
    %v2117 = vlaneseq
    %v2118 = vshrl.u32 %v2117, 7
    %v2119 = vsub.s32 %v1378, %v2118
    %v2120 = vrot.slane %v1996, %v2119
    %v2121 = vsel %vm1383, %v2120, %v2116
    %v2122 = vlaneseq
    %v2123 = vshrl.u32 %v2122, 7
    %v2124 = vsub.s32 %v1385, %v2123
    %v2125 = vrot.slane %v1999, %v2124
    %v2126 = vsel %vm1390, %v2125, %v2121
    %v2127 = vlaneseq
    %v2128 = vshrl.u32 %v2127, 7
    %v2129 = vsub.s32 %v1282, %v2128
    %v2130 = vrot.slane %v2002, %v2129
    %v2131 = vlaneseq
    %v2132 = vshrl.u32 %v2131, 7
    %v2133 = vsub.s32 %v1287, %v2132
    %v2134 = vrot.slane %v2005, %v2133
    %v2135 = vsel %vm1292, %v2134, %v2130
    %v2136 = vlaneseq
    %v2137 = vshrl.u32 %v2136, 7
    %v2138 = vsub.s32 %v1294, %v2137
    %v2139 = vrot.slane %v2008, %v2138
    %v2140 = vsel %vm1299, %v2139, %v2135
    %v2141 = vlaneseq
    %v2142 = vshrl.u32 %v2141, 7
    %v2143 = vsub.s32 %v1301, %v2142
    %v2144 = vrot.slane %v2011, %v2143
    %v2145 = vsel %vm1306, %v2144, %v2140
    %v2146 = vlaneseq
    %v2147 = vshrl.u32 %v2146, 7
    %v2148 = vsub.s32 %v1308, %v2147
    %v2149 = vrot.slane %v2014, %v2148
    %v2150 = vsel %vm1313, %v2149, %v2145
    %v2151 = vlaneseq
    %v2152 = vshrl.u32 %v2151, 7
    %v2153 = vsub.s32 %v1315, %v2152
    %v2154 = vrot.slane %v2017, %v2153
    %v2155 = vsel %vm1320, %v2154, %v2150
    %v2156 = vlaneseq
    %v2157 = vshrl.u32 %v2156, 7
    %v2158 = vsub.s32 %v1322, %v2157
    %v2159 = vrot.slane %v2020, %v2158
    %v2160 = vsel %vm1327, %v2159, %v2155
    %v2161 = vlaneseq
    %v2162 = vshrl.u32 %v2161, 7
    %v2163 = vsub.s32 %v1329, %v2162
    %v2164 = vrot.slane %v2023, %v2163
    %v2165 = vsel %vm1334, %v2164, %v2160
    %v2166 = vlaneseq
    %v2167 = vshrl.u32 %v2166, 7
    %v2168 = vsub.s32 %v1336, %v2167
    %v2169 = vrot.slane %v2026, %v2168
    %v2170 = vsel %vm1341, %v2169, %v2165
    %v2171 = vlaneseq
    %v2172 = vshrl.u32 %v2171, 7
    %v2173 = vsub.s32 %v1343, %v2172
    %v2174 = vrot.slane %v2029, %v2173
    %v2175 = vsel %vm1348, %v2174, %v2170
    %v2176 = vlaneseq
    %v2177 = vshrl.u32 %v2176, 7
    %v2178 = vsub.s32 %v1350, %v2177
    %v2179 = vrot.slane %v2032, %v2178
    %v2180 = vsel %vm1355, %v2179, %v2175
    %v2181 = vlaneseq
    %v2182 = vshrl.u32 %v2181, 7
    %v2183 = vsub.s32 %v1357, %v2182
    %v2184 = vrot.slane %v2035, %v2183
    %v2185 = vsel %vm1362, %v2184, %v2180
    %v2186 = vlaneseq
    %v2187 = vshrl.u32 %v2186, 7
    %v2188 = vsub.s32 %v1364, %v2187
    %v2189 = vrot.slane %v2038, %v2188
    %v2190 = vsel %vm1369, %v2189, %v2185
    %v2191 = vlaneseq
    %v2192 = vshrl.u32 %v2191, 7
    %v2193 = vsub.s32 %v1371, %v2192
    %v2194 = vrot.slane %v2041, %v2193
    %v2195 = vsel %vm1376, %v2194, %v2190
    %v2196 = vlaneseq
    %v2197 = vshrl.u32 %v2196, 7
    %v2198 = vsub.s32 %v1378, %v2197
    %v2199 = vrot.slane %v2044, %v2198
    %v2200 = vsel %vm1383, %v2199, %v2195
    %v2201 = vlaneseq
    %v2202 = vshrl.u32 %v2201, 7
    %v2203 = vsub.s32 %v1385, %v2202
    %v2204 = vrot.slane %v2047, %v2203
    %v2205 = vsel %vm1390, %v2204, %v2200
    %v2206 = vsel %vm1471, %v2205, %v2126
    %2208 = vst [vmem:[#allocation3] sm:$0x3] %v2206
    %v2209 = vadd.f32 %v71, %v2206
    %2210 = vst [vmem:[#allocation7] sm:$0x3] %v2209
    %v2243 = vmul.f32 %v1954, %v38
    %v2244 = vmul.f32 %v1957, %v39
    %v2245 = vmul.f32 %v1960, %v40
    %v2246 = vmul.f32 %v1963, %v41
    %v2247 = vmul.f32 %v1966, %v42
    %v2248 = vmul.f32 %v1969, %v43
    %v2249 = vmul.f32 %v1972, %v44
    %v2250 = vmul.f32 %v1975, %v45
    %v2251 = vmul.f32 %v1978, %v46
    %v2252 = vmul.f32 %v1981, %v47
    %v2253 = vmul.f32 %v1984, %v48
    %v2254 = vmul.f32 %v1987, %v49
    %v2255 = vmul.f32 %v1990, %v50
    %v2256 = vmul.f32 %v1993, %v51
    %v2257 = vmul.f32 %v1996, %v52
    %v2258 = vmul.f32 %v1999, %v53
    %v2259 = vmul.f32 %v2002, %v54
    %v2260 = vmul.f32 %v2005, %v55
    %v2261 = vmul.f32 %v2008, %v56
    %v2262 = vmul.f32 %v2011, %v57
    %v2263 = vmul.f32 %v2014, %v58
    %v2264 = vmul.f32 %v2017, %v59
    %v2265 = vmul.f32 %v2020, %v60
    %v2266 = vmul.f32 %v2023, %v61
    %v2267 = vmul.f32 %v2026, %v62
    %v2268 = vmul.f32 %v2029, %v63
    %v2269 = vmul.f32 %v2032, %v64
    %v2270 = vmul.f32 %v2035, %v65
    %v2271 = vmul.f32 %v2038, %v66
    %v2272 = vmul.f32 %v2041, %v67
    %v2273 = vmul.f32 %v2044, %v68
    %v2274 = vmul.f32 %v2047, %v69
    %v2275 = vsel %vm82, %v2243, 0.0
    %v2276 = vsel %vm82, %v2244, 0.0
    %v2277 = vadd.f32 %v2275, %v2276
    %v2278 = vsel %vm82, %v2245, 0.0
    %v2279 = vadd.f32 %v2277, %v2278
    %v2280 = vsel %vm82, %v2246, 0.0
    %v2281 = vadd.f32 %v2279, %v2280
    %v2282 = vsel %vm82, %v2247, 0.0
    %v2283 = vadd.f32 %v2281, %v2282
    %v2284 = vsel %vm82, %v2248, 0.0
    %v2285 = vadd.f32 %v2283, %v2284
    %v2286 = vsel %vm82, %v2249, 0.0
    %v2287 = vadd.f32 %v2285, %v2286
    %v2288 = vsel %vm82, %v2250, 0.0
    %v2289 = vadd.f32 %v2287, %v2288
    %v2290 = vsel %vm82, %v2251, 0.0
    %v2291 = vadd.f32 %v2289, %v2290
    %v2292 = vsel %vm82, %v2252, 0.0
    %v2293 = vadd.f32 %v2291, %v2292
    %v2294 = vsel %vm82, %v2253, 0.0
    %v2295 = vadd.f32 %v2293, %v2294
    %v2296 = vsel %vm82, %v2254, 0.0
    %v2297 = vadd.f32 %v2295, %v2296
    %v2298 = vsel %vm82, %v2255, 0.0
    %v2299 = vadd.f32 %v2297, %v2298
    %v2300 = vsel %vm82, %v2256, 0.0
    %v2301 = vadd.f32 %v2299, %v2300
    %v2302 = vsel %vm82, %v2257, 0.0
    %v2303 = vadd.f32 %v2301, %v2302
    %v2304 = vsel %vm82, %v2258, 0.0
    %v2305 = vadd.f32 %v2303, %v2304
    %v2306 = vrot.slane %v2305, 4
    %v2307 = vadd.f32 %v2305, %v2306
    %v2308 = vrot.slane %v2307, 2
    %v2309 = vadd.f32 %v2307, %v2308
    %v2310 = vrot.slane %v2309, 1
    %v2311 = vadd.f32 %v2309, %v2310
    %v2312 = vsel %vm82, %v2259, 0.0
    %v2313 = vsel %vm82, %v2260, 0.0
    %v2314 = vadd.f32 %v2312, %v2313
    %v2315 = vsel %vm82, %v2261, 0.0
    %v2316 = vadd.f32 %v2314, %v2315
    %v2317 = vsel %vm82, %v2262, 0.0
    %v2318 = vadd.f32 %v2316, %v2317
    %v2319 = vsel %vm82, %v2263, 0.0
    %v2320 = vadd.f32 %v2318, %v2319
    %v2321 = vsel %vm82, %v2264, 0.0
    %v2322 = vadd.f32 %v2320, %v2321
    %v2323 = vsel %vm82, %v2265, 0.0
    %v2324 = vadd.f32 %v2322, %v2323
    %v2325 = vsel %vm82, %v2266, 0.0
    %v2326 = vadd.f32 %v2324, %v2325
    %v2327 = vsel %vm82, %v2267, 0.0
    %v2328 = vadd.f32 %v2326, %v2327
    %v2329 = vsel %vm82, %v2268, 0.0
    %v2330 = vadd.f32 %v2328, %v2329
    %v2331 = vsel %vm82, %v2269, 0.0
    %v2332 = vadd.f32 %v2330, %v2331
    %v2333 = vsel %vm82, %v2270, 0.0
    %v2334 = vadd.f32 %v2332, %v2333
    %v2335 = vsel %vm82, %v2271, 0.0
    %v2336 = vadd.f32 %v2334, %v2335
    %v2337 = vsel %vm82, %v2272, 0.0
    %v2338 = vadd.f32 %v2336, %v2337
    %v2339 = vsel %vm82, %v2273, 0.0
    %v2340 = vadd.f32 %v2338, %v2339
    %v2341 = vsel %vm82, %v2274, 0.0
    %v2342 = vadd.f32 %v2340, %v2341
    %v2343 = vrot.slane %v2342, 4
    %v2344 = vadd.f32 %v2342, %v2343
    %v2345 = vrot.slane %v2344, 2
    %v2346 = vadd.f32 %v2344, %v2345
    %v2347 = vrot.slane %v2346, 1
    %v2348 = vadd.f32 %v2346, %v2347
    %v2351 = vsel %vm1471, %v2348, %v2311
    %vm2353 = vcmask 517120
    %2354 = vst.msk [vmem:[#allocation5] sm:$0x3] %vm2353, %v2351
    // Predicated region
    $region38: #{tpu_custom_call.1} parent=1 // pred_check
      _
    $region39: #{tpu_custom_call.1} parent=1 // pred_check_branch
      %2356 = sbr.rel (0) target = $region41
    $region40: #{tpu_custom_call.1} parent=1 // pred_region
      %s2358 = ssub.s32 32, 32
      %2359 = vsyncadd [#allocation4], %s2358
      %s2361 = sshll.u32 [#allocation3], 4
      %s2362 = int_to_ptr.vmem [resolvable:$true] %s2361
      %2364 = dma.vmem_to_hbm [thread:$0]  %s2362, 32, %s9, [#allocation4]
    $region41: #{tpu_custom_call.1} parent=1 // pred_fallthru
      _
    // Predicated region
    $region42: #{tpu_custom_call.1} parent=1 // pred_check
      _
    $region43: #{tpu_custom_call.1} parent=1 // pred_check_branch
      %2366 = sbr.rel (0) target = $region45
    $region44: #{tpu_custom_call.1} parent=1 // pred_region
      %s2368 = ssub.s32 32, 32
      %2369 = vsyncadd [#allocation6], %s2368
      %s2371 = sshll.u32 [#allocation5], 4
      %s2372 = int_to_ptr.vmem [resolvable:$true] %s2371
      %2374 = dma.vmem_to_hbm [thread:$0]  %s2372, 32, %s10, [#allocation6]
    $region45: #{tpu_custom_call.1} parent=1 // pred_fallthru
      _
    // Predicated region
    $region46: #{tpu_custom_call.1} parent=1 // pred_check
      _
    $region47: #{tpu_custom_call.1} parent=1 // pred_check_branch
      %2376 = sbr.rel (0) target = $region49
    $region48: #{tpu_custom_call.1} parent=1 // pred_region
      %s2378 = ssub.s32 32, 32
      %2379 = vsyncadd [#allocation6], %s2378
      %s2381 = sshll.u32 [#allocation7], 4
      %s2382 = int_to_ptr.vmem [resolvable:$true] %s2381
      %2384 = dma.vmem_to_hbm [thread:$0]  %s2382, 32, %s11, [#allocation6]
    $region49: #{tpu_custom_call.1} parent=1 // pred_fallthru
      _
    // Predicated region
    $region50: #{tpu_custom_call.1} parent=1 // pred_check
      _
    $region51: #{tpu_custom_call.1} parent=1 // pred_check_branch
      %2386 = sbr.rel (0) target = $region53
    $region52: #{tpu_custom_call.1} parent=1 // pred_region
      %2387 = dma.done [#allocation4], 32
    $region53: #{tpu_custom_call.1} parent=1 // pred_fallthru
      _
    // Predicated region
    $region54: #{tpu_custom_call.1} parent=1 // pred_check
      _
    $region55: #{tpu_custom_call.1} parent=1 // pred_check_branch
      %2389 = sbr.rel (0) target = $region57
    $region56: #{tpu_custom_call.1} parent=1 // pred_region
      %2390 = dma.done [#allocation6], 32
    $region57: #{tpu_custom_call.1} parent=1 // pred_fallthru
      _
    // Predicated region
    $region58: #{tpu_custom_call.1} parent=1 // pred_check
      _
    $region59: #{tpu_custom_call.1} parent=1 // pred_check_branch
      %2392 = sbr.rel (0) target = $region61
    $region60: #{tpu_custom_call.1} parent=1 // pred_region
      %2393 = dma.done [#allocation6], 32
    $region61: #{tpu_custom_call.1} parent=1 // pred_fallthru
      _
    %2394 = vsyncpa [#allocation4], 1
    %2395 = vsyncpa [#allocation6], 1

</llo_original>
